<compile_context>
chip_gen: v5e
topology: v5e:2x2
jax: 0.10.0
libtpu: 0.0.40
codegen_flags: <defaults>
</compile_context>

<pallas_src>
import functools

import jax
import jax.numpy as jnp
from jax.experimental import pallas as pl
from jax.experimental.pallas import tpu as pltpu


# --------------------------------------------------------------------------
# Kernel 1 (fused): synthetic model head + CrossEntropyLoss2d partial sums.
#   layout: x3 (N, C3, HW), x2 (N, C2, HW), targets (N, 1, HW) int8,
#           seg logits (N, Cseg, HW)  -> pixels on the lane (128) axis.
#   grid (N, SPLIT, S): N and SPLIT are "parallel" (megacore / v7x 2-TC),
#   S is the in-core pixel-tile loop ("arbitrary", accumulator axis).
# --------------------------------------------------------------------------
def _fused_head_kernel(x3_ref, x2_ref, w3T_ref, w2T_ref, bseg_ref, tgt_ref,
                       seg_ref, p3_ref, p2_ref, nll_ref, cnt_ref,
                       p3_acc, p2_acc, nll_lanes, cnt_lanes,
                       *, hw, tile_s, needs_mask, ignore_index):
    s = pl.program_id(2)

    @pl.when(s == 0)
    def _init():
        p3_acc[...] = jnp.zeros_like(p3_acc)
        p2_acc[...] = jnp.zeros_like(p2_acc)
        nll_lanes[...] = jnp.zeros_like(nll_lanes)
        cnt_lanes[...] = jnp.zeros_like(cnt_lanes)

    x3 = x3_ref[0]                                            # (C3, TS)
    x2 = x2_ref[0]                                            # (C2, TS)

    # 1x1-conv segmentation head, split over the two feature streams
    # (no wrapper-side concat of the big tensors).
    seg = (jnp.dot(w3T_ref[...], x3, preferred_element_type=jnp.float32)
           + jnp.dot(w2T_ref[...], x2, preferred_element_type=jnp.float32)
           + bseg_ref[...])                                   # (Cseg, TS) f32
    seg_ref[0] = seg.astype(seg_ref.dtype)

    tgt = tgt_ref[0].astype(jnp.int32)                        # (1, TS)
    valid = tgt != ignore_index
    if needs_mask:
        # masked tail tile for non-128-divisible HW
        lane = jax.lax.broadcasted_iota(jnp.int32, (1, tile_s), 1)
        pix0 = (pl.program_id(1) * pl.num_programs(2) + s) * tile_s
        inb = (pix0 + lane) < hw
        valid = jnp.logical_and(valid, inb)
        x3s = jnp.where(inb, x3, 0).astype(jnp.float32)
        x2s = jnp.where(inb, x2, 0).astype(jnp.float32)
    else:
        x3s = x3.astype(jnp.float32)
        x2s = x2.astype(jnp.float32)

    # running spatial sums for the global-average-pool road head
    p3_acc[...] += jnp.sum(x3s, axis=1, keepdims=True)        # (C3, 1)
    p2_acc[...] += jnp.sum(x2s, axis=1, keepdims=True)        # (C2, 1)

    # fused CE2d partial: no (Cseg, TS) log_softmax materialization; only lse
    # and the picked shifted logit are formed, accumulated lane-wise (the
    # single cross-lane reduce is deferred to the last step).
    m = jnp.max(seg, axis=0, keepdims=True)                   # (1, TS)
    z = seg - m
    lse = jnp.log(jnp.sum(jnp.exp(z), axis=0, keepdims=True))  # (1, TS)
    cls = jax.lax.broadcasted_iota(jnp.int32, z.shape, 0)
    picked_z = jnp.sum(jnp.where(cls == tgt, z, 0.0),
                       axis=0, keepdims=True)                 # (1, TS)
    nll_lanes[...] += jnp.where(valid, lse - picked_z, 0.0)
    cnt_lanes[...] += jnp.where(valid, 1.0, 0.0)

    @pl.when(s == pl.num_programs(2) - 1)
    def _fin():
        p3_ref[...] = p3_acc[...].reshape(p3_ref.shape)
        p2_ref[...] = p2_acc[...].reshape(p2_ref.shape)
        nll_ref[...] = jnp.sum(nll_lanes[...], keepdims=True).reshape(nll_ref.shape)
        cnt_ref[...] = jnp.sum(cnt_lanes[...], keepdims=True).reshape(cnt_ref.shape)


def _plan_tiling(hw, *, tile_s=None, num_splits=1, cap=32768):
    """Pick (tile_s, num_splits, grid_s, needs_mask).

    Constraints: a non-full-row pixel tile must be a multiple of 128 (lane
    alignment); the 2-way core split is only used when it divides evenly
    (otherwise fall back to a single split with a masked tail tile)."""
    num_splits = max(int(num_splits), 1)
    if num_splits > 1 and hw % num_splits != 0:
        num_splits = 1
    per = hw // num_splits

    if tile_s is None:
        if per <= cap:
            tile_s = per
        else:
            t = (cap // 128) * 128
            tile_s = 0
            while t >= 128:
                if per % t == 0:
                    tile_s = t
                    break
                t -= 128
            if tile_s == 0:                    # no aligned divisor: masked tail
                tile_s = (cap // 128) * 128
    tile_s = int(tile_s)

    if tile_s != hw and tile_s % 128 != 0:
        # not lane-aligned and not a full row -> use the full row, one split
        num_splits = 1
        per = hw
        tile_s = hw

    if per % tile_s == 0:
        grid_s = per // tile_s
        needs_mask = False
    else:
        # masked tail only supported without a core split
        num_splits = 1
        grid_s = -(-hw // tile_s)
        needs_mask = True
    return tile_s, num_splits, grid_s, needs_mask


def fused_model_and_seg_loss(x3, x2, tgt_i8, w3T, w2T, b_segc, *, tile_s,
                             num_splits, grid_s, needs_mask, seg_dtype,
                             ignore_index):
    N, C3, HW = x3.shape
    C2 = x2.shape[1]
    Cseg = w3T.shape[0]
    S = grid_s

    # explicit scoped-VMEM budget (v5e default is only 16 MiB)
    in_b = jnp.dtype(x3.dtype).itemsize
    out_b = jnp.dtype(seg_dtype).itemsize
    step_bytes = 2 * tile_s * ((C3 + C2) * in_b + 1 + Cseg * out_b) \
        + 2 * tile_s * 4
    vmem_limit = int(min(48 * 2**20, max(32 * 2**20, 3 * step_bytes)))

    kernel = functools.partial(_fused_head_kernel, hw=HW, tile_s=tile_s,
                               needs_mask=needs_mask,
                               ignore_index=ignore_index)
    seg, p3, p2, nll, cnt = pl.pallas_call(
        kernel,
        out_shape=(
            jax.ShapeDtypeStruct((N, Cseg, HW), seg_dtype),
            jax.ShapeDtypeStruct((N, num_splits, C3, 1), jnp.float32),
            jax.ShapeDtypeStruct((N, num_splits, C2, 1), jnp.float32),
            jax.ShapeDtypeStruct((N, num_splits, 1, 1), jnp.float32),
            jax.ShapeDtypeStruct((N, num_splits, 1, 1), jnp.float32),
        ),
        grid_spec=pltpu.PrefetchScalarGridSpec(
            num_scalar_prefetch=0,
            grid=(N, num_splits, S),
            in_specs=[
                pl.BlockSpec((1, C3, tile_s), lambda n, h, s: (n, 0, h * S + s)),
                pl.BlockSpec((1, C2, tile_s), lambda n, h, s: (n, 0, h * S + s)),
                pl.BlockSpec((Cseg, C3), lambda n, h, s: (0, 0)),
                pl.BlockSpec((Cseg, C2), lambda n, h, s: (0, 0)),
                pl.BlockSpec((Cseg, 1), lambda n, h, s: (0, 0)),
                pl.BlockSpec((1, 1, tile_s), lambda n, h, s: (n, 0, h * S + s)),
            ],
            out_specs=[
                pl.BlockSpec((1, Cseg, tile_s), lambda n, h, s: (n, 0, h * S + s)),
                pl.BlockSpec((1, 1, C3, 1), lambda n, h, s: (n, h, 0, 0)),
                pl.BlockSpec((1, 1, C2, 1), lambda n, h, s: (n, h, 0, 0)),
                pl.BlockSpec((1, 1, 1, 1), lambda n, h, s: (n, h, 0, 0)),
                pl.BlockSpec((1, 1, 1, 1), lambda n, h, s: (n, h, 0, 0)),
            ],
            scratch_shapes=[
                pltpu.VMEM((C3, 1), jnp.float32),
                pltpu.VMEM((C2, 1), jnp.float32),
                pltpu.VMEM((1, tile_s), jnp.float32),
                pltpu.VMEM((1, tile_s), jnp.float32),
            ]),
        compiler_params=pltpu.CompilerParams(
            dimension_semantics=("parallel", "parallel", "arbitrary"),
            vmem_limit_bytes=vmem_limit),
    )(x3, x2, w3T, w2T, b_segc, tgt_i8)
    return seg, p3, p2, nll, cnt


# --------------------------------------------------------------------------
# Kernel 2 (tiny, single step): road head (GAP + linear), weighted road CE,
# CE2d mean, uncertainty weighting via log_vars. O(N*Cr) data; cost is the
# launch itself (could equally be plain jnp -- kept as Pallas for completeness).
# --------------------------------------------------------------------------
def _finalize_kernel(pooled_ref, nll_ref, cnt_ref, wroad_ref, broad_ref,
                     rgt_ref, rw_ref, lv_ref, loss_ref, road_ref, *, hw):
    pooled_mean = pooled_ref[...] * (1.0 / float(hw))          # (N, Cf)
    road = (jnp.dot(pooled_mean, wroad_ref[...],
                    preferred_element_type=jnp.float32) + broad_ref[...])
    road_ref[...] = road.astype(road_ref.dtype)                # (N, Cr)

    # CrossEntropyLoss2d: mean over non-ignored pixels of all images
    loss2d = jnp.sum(nll_ref[...], keepdims=True) / jnp.sum(cnt_ref[...])

    # class-weighted CrossEntropyLoss on road logits
    m2 = jnp.max(road, axis=-1, keepdims=True)
    z2 = road - m2
    lse2 = jnp.log(jnp.sum(jnp.exp(z2), axis=-1, keepdims=True))   # (N, 1)
    cls2 = jax.lax.broadcasted_iota(jnp.int32, road.shape, 1)
    onehot = cls2 == rgt_ref[...]
    picked_z2 = jnp.sum(jnp.where(onehot, z2, 0.0),
                        axis=-1, keepdims=True)                    # (N, 1)
    wsel = jnp.sum(jnp.where(onehot, rw_ref[...], 0.0),
                   axis=-1, keepdims=True)                         # (N, 1)
    loss1d = jnp.sum(wsel * (lse2 - picked_z2), keepdims=True) / jnp.sum(wsel)

    lv0 = lv_ref[0]                                                # SMEM scalars
    lv1 = lv_ref[1]
    loss_ref[...] = (jnp.exp(-lv0) * loss2d + lv0
                     + jnp.exp(-lv1) * loss1d + lv1)


def finalize_multitask_loss(pooled, nll_sums, cnt_sums, w_road, b_roadr,
                            road_gt, weights_road, log_vars, *, hw):
    N, Cf = pooled.shape
    Cr = w_road.shape[1]
    kernel = functools.partial(_finalize_kernel, hw=hw)
    loss, road = pl.pallas_call(
        kernel,
        out_shape=(jax.ShapeDtypeStruct((1, 1), jnp.float32),
                   jax.ShapeDtypeStruct((N, Cr), jnp.float32)),
        grid_spec=pltpu.PrefetchScalarGridSpec(
            num_scalar_prefetch=0,
            grid=(1,),
            in_specs=[
                pl.BlockSpec((N, Cf), lambda i: (0, 0)),
                pl.BlockSpec((N, 1), lambda i: (0, 0)),
                pl.BlockSpec((N, 1), lambda i: (0, 0)),
                pl.BlockSpec((Cf, Cr), lambda i: (0, 0)),
                pl.BlockSpec((1, Cr), lambda i: (0, 0)),
                pl.BlockSpec((N, 1), lambda i: (0, 0)),
                pl.BlockSpec((1, Cr), lambda i: (0, 0)),
                pl.BlockSpec(memory_space=pltpu.MemorySpace.SMEM),
            ],
            out_specs=[
                pl.BlockSpec((1, 1), lambda i: (0, 0)),
                pl.BlockSpec((N, Cr), lambda i: (0, 0)),
            ]),
        compiler_params=pltpu.CompilerParams(
            dimension_semantics=("arbitrary",)),
    )(pooled, nll_sums, cnt_sums, w_road, b_roadr, road_gt, weights_road,
      log_vars)
    return loss[0, 0], road


# --------------------------------------------------------------------------
# MultiTaskLossWrapper equivalent
# --------------------------------------------------------------------------
class MultiTaskLossWrapperPallas:
    def __init__(self, task_num, model_params, ignore_index=-100):
        self.task_num = task_num
        self.ignore_index = ignore_index
        w_seg, b_seg, w_road, b_road = model_params
        self.w_segT = jnp.asarray(w_seg, jnp.float32).T              # (Cseg, Cf)
        self.b_segc = jnp.asarray(b_seg, jnp.float32).reshape(-1, 1)  # (Cseg, 1)
        self.w_road = jnp.asarray(w_road, jnp.float32)               # (Cf, Cr)
        self.b_roadr = jnp.asarray(b_road, jnp.float32).reshape(1, -1)  # (1, Cr)
        # torch.nn.Parameter(torch.zeros(task_num))
        self.log_vars = jnp.zeros((task_num,), jnp.float32)

    def __call__(self, input_3d, input_2d, target, road_gt, weights_road, *,
                 tile_s=None, num_splits=1, pixel_tile_cap=32768,
                 seg_out_dtype=jnp.float32):
        N, C3, H, W = input_3d.shape
        C2 = input_2d.shape[1]
        HW = H * W
        Cseg = self.w_segT.shape[0]

        # NCHW is already channels-on-sublanes / pixels-on-lanes: reshape only,
        # no concat of the big feature tensors, no dtype upcast (bf16 inputs
        # are read as-is and promoted in-register).
        x3 = input_3d.reshape(N, C3, HW)
        x2 = input_2d.reshape(N, C2, HW)
        tgt = target.reshape(N, 1, HW).astype(jnp.int8)

        w3T = self.w_segT[:, :C3]
        w2T = self.w_segT[:, C3:]

        ts, ns, gs, mask = _plan_tiling(HW, tile_s=tile_s,
                                        num_splits=num_splits,
                                        cap=pixel_tile_cap)

        seg_flat, p3, p2, nll, cnt = fused_model_and_seg_loss(
            x3, x2, tgt, w3T, w2T, self.b_segc,
            tile_s=ts, num_splits=ns, grid_s=gs, needs_mask=mask,
            seg_dtype=seg_out_dtype, ignore_index=self.ignore_index)

        # tiny O(N*Cf) combine of per-core partials (XLA fuses these for free)
        pooled = jnp.concatenate([jnp.sum(p3, axis=1)[..., 0],
                                  jnp.sum(p2, axis=1)[..., 0]], axis=-1)
        nll_sums = jnp.sum(nll, axis=1)[..., 0]                      # (N, 1)
        cnt_sums = jnp.sum(cnt, axis=1)[..., 0]                      # (N, 1)

        total, road_pred = finalize_multitask_loss(
            pooled, nll_sums, cnt_sums, self.w_road, self.b_roadr,
            road_gt.reshape(N, 1).astype(jnp.int32),
            weights_road.reshape(1, -1).astype(jnp.float32),
            self.log_vars, hw=HW)

        seg_out = seg_flat.reshape(N, Cseg, H, W)   # already NCHW, no transpose
        output = (seg_out, road_pred)
        return total, road_pred, output


# --------------------------------------------------------------------------
# Pure-JAX reference for verification
# --------------------------------------------------------------------------
def _reference(input_3d, input_2d, target, road_gt, weights_road, params,
               log_vars, ignore_index=-100):
    w_seg, b_seg, w_road, b_road = params
    N, C3, H, W = input_3d.shape
    HW = H * W
    f3 = input_3d.reshape(N, C3, HW).astype(jnp.float32)
    f2 = input_2d.reshape(N, -1, HW).astype(jnp.float32)
    feats = jnp.transpose(jnp.concatenate([f3, f2], axis=1), (0, 2, 1))
    seg = feats @ w_seg + b_seg                                  # (N, HW, Cseg)
    road = feats.mean(axis=1) @ w_road + b_road                  # (N, Cr)

    logsm = jax.nn.log_softmax(seg, axis=-1)
    tgt = target.reshape(N, HW)
    valid = tgt != ignore_index
    safe_tgt = jnp.where(valid, tgt, 0)
    picked = jnp.take_along_axis(logsm, safe_tgt[..., None], axis=-1)[..., 0]
    loss2d = -jnp.sum(jnp.where(valid, picked, 0.0)) / jnp.sum(valid)

    logsm_r = jax.nn.log_softmax(road, axis=-1)
    pr = jnp.take_along_axis(logsm_r, road_gt[:, None], axis=-1)[:, 0]
    w = weights_road[road_gt]
    loss1d = -(w * pr).sum() / w.sum()

    lv0, lv1 = log_vars[0], log_vars[1]
    total = jnp.exp(-lv0) * loss2d + lv0 + jnp.exp(-lv1) * loss1d + lv1
    seg_nchw = jnp.transpose(seg, (0, 2, 1)).reshape(N, -1, H, W)
    return total, seg_nchw, road


if __name__ == "__main__":
    key = jax.random.PRNGKey(0)
    N, C3, C2, H, W = 2, 4, 3, 16, 16
    Cseg, Cr = 5, 4
    ks = jax.random.split(key, 8)

    input_3d = jax.random.normal(ks[0], (N, C3, H, W), jnp.float32)
    input_2d = jax.random.normal(ks[1], (N, C2, H, W), jnp.float32)
    target = jax.random.randint(ks[2], (N, H, W), 0, Cseg, jnp.int32)
    road_gt = jax.random.randint(ks[3], (N,), 0, Cr, jnp.int32)
    weights_road = jnp.array([1.0, 2.0, 0.5, 1.5], jnp.float32)

    # deterministic synthetic model parameters
    Cf = C3 + C2
    w_seg = 0.1 * jax.random.normal(ks[4], (Cf, Cseg), jnp.float32)
    b_seg = 0.01 * jnp.arange(Cseg, dtype=jnp.float32).reshape(1, Cseg)
    w_road = 0.1 * jax.random.normal(ks[5], (Cf, Cr), jnp.float32)
    b_road = 0.01 * jnp.arange(Cr, dtype=jnp.float32).reshape(1, Cr)
    params = (w_seg, b_seg, w_road, b_road)

    wrapper = MultiTaskLossWrapperPallas(task_num=2, model_params=params)

    # ---- test 1: auto tiling, f32 everywhere -------------------------------
    total, road_pred, (seg_out, _) = wrapper(input_3d, input_2d, target,
                                             road_gt, weights_road)
    total = jax.block_until_ready(total)
    ref_total, ref_seg, ref_road = _reference(input_3d, input_2d, target,
                                              road_gt, weights_road, params,
                                              wrapper.log_vars)
    assert seg_out.shape == (N, Cseg, H, W) and road_pred.shape == (N, Cr)
    assert jnp.allclose(seg_out, ref_seg, atol=1e-3), "seg mismatch (t1)"
    assert jnp.allclose(road_pred, ref_road, atol=1e-3), "road mismatch (t1)"
    assert abs(float(total) - float(ref_total)) < 1e-3, (float(total),
                                                         float(ref_total))

    # ---- test 2: bf16 feature reads + bf16 seg store, 2-way pixel core split
    x3_bf = input_3d.astype(jnp.bfloat16)
    x2_bf = input_2d.astype(jnp.bfloat16)
    total2, road2, (seg2, _) = wrapper(x3_bf, x2_bf, target, road_gt,
                                       weights_road, tile_s=128, num_splits=2,
                                       seg_out_dtype=jnp.bfloat16)
    total2 = jax.block_until_ready(total2)
    ref_total2, ref_seg2, ref_road2 = _reference(
        x3_bf.astype(jnp.float32), x2_bf.astype(jnp.float32), target, road_gt,
        weights_road, params, wrapper.log_vars)
    assert jnp.allclose(seg2.astype(jnp.float32), ref_seg2, atol=3e-2), "seg (t2)"
    assert jnp.allclose(road2, ref_road2, atol=2e-2), "road (t2)"
    assert abs(float(total2) - float(ref_total2)) < 2e-2

    # ---- test 3: non-128-divisible HW (masked tail tile) + ignore_index ----
    H3, W3 = 20, 20
    x3_3 = jax.random.normal(ks[6], (1, C3, H3, W3), jnp.float32)
    x2_3 = jax.random.normal(ks[7], (1, C2, H3, W3), jnp.float32)
    tgt3 = jax.random.randint(jax.random.PRNGKey(7), (1, H3, W3), 0, Cseg,
                              jnp.int32)
    tgt3 = tgt3.at[0, :3, :].set(-100)           # ignore_index pixels
    rgt3 = jnp.array([1], jnp.int32)
    total3, road3, (seg3, _) = wrapper(x3_3, x2_3, tgt3, rgt3, weights_road,
                                       tile_s=128)
    total3 = jax.block_until_ready(total3)
    ref_total3, ref_seg3, ref_road3 = _reference(x3_3, x2_3, tgt3, rgt3,
                                                 weights_road, params,
                                                 wrapper.log_vars)
    assert jnp.allclose(seg3, ref_seg3, atol=1e-3), "seg (t3)"
    assert jnp.allclose(road3, ref_road3, atol=1e-3), "road (t3)"
    assert abs(float(total3) - float(ref_total3)) < 1e-3

    print("KERNEL_OK")
</pallas_src>

<mosaic_0001>
module attributes {stable_mosaic.version = 11 : i64} {
  func.func @_fused_head_kernel(%arg0: i32, %arg1: i32, %arg2: i32, %arg3: memref<1x4x256xf32, #tpu.memory_space<vmem>>, %arg4: memref<1x3x256xf32, #tpu.memory_space<vmem>>, %arg5: memref<5x4xf32, #tpu.memory_space<vmem>>, %arg6: memref<5x3xf32, #tpu.memory_space<vmem>>, %arg7: memref<5x1xf32, #tpu.memory_space<vmem>>, %arg8: memref<1x1x256xi8, #tpu.memory_space<vmem>>, %arg9: memref<1x5x256xf32, #tpu.memory_space<vmem>>, %arg10: memref<1x1x4x1xf32, #tpu.memory_space<vmem>>, %arg11: memref<1x1x3x1xf32, #tpu.memory_space<vmem>>, %arg12: memref<1x1x1x1xf32, #tpu.memory_space<vmem>>, %arg13: memref<1x1x1x1xf32, #tpu.memory_space<vmem>>, %arg14: memref<4x1xf32, #tpu.memory_space<vmem>>, %arg15: memref<3x1xf32, #tpu.memory_space<vmem>>, %arg16: memref<1x256xf32, #tpu.memory_space<vmem>>, %arg17: memref<1x256xf32, #tpu.memory_space<vmem>>) attributes {dimension_semantics = [#tpu.dimension_semantics<parallel>, #tpu.dimension_semantics<parallel>, #tpu.dimension_semantics<arbitrary>], iteration_bounds = array<i64: 2, 1, 1>, scalar_prefetch = 0 : i64, scratch_operands = 4 : i64, tpu.core_type = #tpu.core_type<tc>, window_params = [{transform_indices = @transform_0, window_bounds = array<i64: 1, 4, 256>}, {transform_indices = @transform_1, window_bounds = array<i64: 1, 3, 256>}, {pipeline_mode = #tpu.pipeline_mode<synchronous>, transform_indices = @transform_2, window_bounds = array<i64: 5, 4>}, {pipeline_mode = #tpu.pipeline_mode<synchronous>, transform_indices = @transform_3, window_bounds = array<i64: 5, 3>}, {pipeline_mode = #tpu.pipeline_mode<synchronous>, transform_indices = @transform_4, window_bounds = array<i64: 5, 1>}, {transform_indices = @transform_5, window_bounds = array<i64: 1, 1, 256>}, {transform_indices = @transform_6, window_bounds = array<i64: 1, 5, 256>}, {transform_indices = @transform_7, window_bounds = array<i64: 1, 1, 4, 1>}, {transform_indices = @transform_8, window_bounds = array<i64: 1, 1, 3, 1>}, {transform_indices = @transform_9, window_bounds = array<i64: 1, 1, 1, 1>}, {transform_indices = @transform_10, window_bounds = array<i64: 1, 1, 1, 1>}]} {
    %c0_i32 = arith.constant 0 : i32
    %0 = arith.cmpi eq, %arg2, %c0_i32 : i32
    %1 = arith.extui %0 : i1 to i32
    %c0_i32_0 = arith.constant 0 : i32
    %2 = arith.cmpi ne, %1, %c0_i32_0 : i32
    scf.if %2 {
      %cst_46 = arith.constant 0.000000e+00 : f32
      %63 = vector.broadcast %cst_46 : f32 to vector<4x1xf32>
      %c0_47 = arith.constant 0 : index
      %c0_48 = arith.constant 0 : index
      %64 = vector.load %arg14[%c0_47, %c0_48] : memref<4x1xf32, #tpu.memory_space<vmem>>, vector<4x1xf32>
      tpu.vector_store %arg14[%c0_47, %c0_48], %63 {strides = array<i32>} : memref<4x1xf32, #tpu.memory_space<vmem>>, vector<4x1xf32>,
      %cst_49 = arith.constant 0.000000e+00 : f32
      %65 = vector.broadcast %cst_49 : f32 to vector<3x1xf32>
      %c0_50 = arith.constant 0 : index
      %c0_51 = arith.constant 0 : index
      %66 = vector.load %arg15[%c0_50, %c0_51] : memref<3x1xf32, #tpu.memory_space<vmem>>, vector<3x1xf32>
      tpu.vector_store %arg15[%c0_50, %c0_51], %65 {strides = array<i32>} : memref<3x1xf32, #tpu.memory_space<vmem>>, vector<3x1xf32>,
      %cst_52 = arith.constant 0.000000e+00 : f32
      %67 = vector.broadcast %cst_52 : f32 to vector<1x256xf32>
      %c0_53 = arith.constant 0 : index
      %c0_54 = arith.constant 0 : index
      %68 = vector.load %arg16[%c0_53, %c0_54] : memref<1x256xf32, #tpu.memory_space<vmem>>, vector<1x256xf32>
      tpu.vector_store %arg16[%c0_53, %c0_54], %67 {strides = array<i32>} : memref<1x256xf32, #tpu.memory_space<vmem>>, vector<1x256xf32>,
      %cst_55 = arith.constant 0.000000e+00 : f32
      %69 = vector.broadcast %cst_55 : f32 to vector<1x256xf32>
      %c0_56 = arith.constant 0 : index
      %c0_57 = arith.constant 0 : index
      %70 = vector.load %arg17[%c0_56, %c0_57] : memref<1x256xf32, #tpu.memory_space<vmem>>, vector<1x256xf32>
      tpu.vector_store %arg17[%c0_56, %c0_57], %69 {strides = array<i32>} : memref<1x256xf32, #tpu.memory_space<vmem>>, vector<1x256xf32>,
    } else {
    }
    %c0 = arith.constant 0 : index
    %c0_1 = arith.constant 0 : index
    %c0_2 = arith.constant 0 : index
    %3 = vector.load %arg3[%c0, %c0_1, %c0_2] : memref<1x4x256xf32, #tpu.memory_space<vmem>>, vector<1x4x256xf32>
    %4 = vector.shape_cast %3 : vector<1x4x256xf32> to vector<4x256xf32>
    %c0_3 = arith.constant 0 : index
    %c0_4 = arith.constant 0 : index
    %c0_5 = arith.constant 0 : index
    %5 = vector.load %arg4[%c0_3, %c0_4, %c0_5] : memref<1x3x256xf32, #tpu.memory_space<vmem>>, vector<1x3x256xf32>
    %6 = vector.shape_cast %5 : vector<1x3x256xf32> to vector<3x256xf32>
    %c0_6 = arith.constant 0 : index
    %c0_7 = arith.constant 0 : index
    %7 = vector.load %arg5[%c0_6, %c0_7] : memref<5x4xf32, #tpu.memory_space<vmem>>, vector<5x4xf32>
    %cst = arith.constant dense<0.000000e+00> : vector<5x256xf32>
    %8 = tpu.matmul %7, %4, %cst {dimension_numbers = #tpu.dot_dimension_numbers<[1], [0], [0], [1], [0, 0, 1, 1], [], []>} : vector<5x4xf32>, vector<4x256xf32>, vector<5x256xf32> -> vector<5x256xf32>
    %c0_8 = arith.constant 0 : index
    %c0_9 = arith.constant 0 : index
    %9 = vector.load %arg6[%c0_8, %c0_9] : memref<5x3xf32, #tpu.memory_space<vmem>>, vector<5x3xf32>
    %cst_10 = arith.constant dense<0.000000e+00> : vector<5x256xf32>
    %10 = tpu.matmul %9, %6, %cst_10 {dimension_numbers = #tpu.dot_dimension_numbers<[1], [0], [0], [1], [0, 0, 1, 1], [], []>} : vector<5x3xf32>, vector<3x256xf32>, vector<5x256xf32> -> vector<5x256xf32>
    %11 = arith.addf %8, %10 : vector<5x256xf32>
    %c0_11 = arith.constant 0 : index
    %c0_12 = arith.constant 0 : index
    %12 = vector.load %arg7[%c0_11, %c0_12] : memref<5x1xf32, #tpu.memory_space<vmem>>, vector<5x1xf32>
    %13 = vector.broadcast %12 : vector<5x1xf32> to vector<5x256xf32>
    %14 = arith.addf %11, %13 : vector<5x256xf32>
    %c0_13 = arith.constant 0 : index
    %c0_14 = arith.constant 0 : index
    %c0_15 = arith.constant 0 : index
    %15 = vector.load %arg9[%c0_13, %c0_14, %c0_15] : memref<1x5x256xf32, #tpu.memory_space<vmem>>, vector<1x5x256xf32>
    %16 = vector.shape_cast %15 : vector<1x5x256xf32> to vector<5x256xf32>
    %17 = vector.shape_cast %14 : vector<5x256xf32> to vector<1x5x256xf32>
    tpu.vector_store %arg9[%c0_13, %c0_14, %c0_15], %17 {strides = array<i32>} : memref<1x5x256xf32, #tpu.memory_space<vmem>>, vector<1x5x256xf32>,
    %c0_16 = arith.constant 0 : index
    %c0_17 = arith.constant 0 : index
    %c0_18 = arith.constant 0 : index
    %18 = vector.load %arg8[%c0_16, %c0_17, %c0_18] : memref<1x1x256xi8, #tpu.memory_space<vmem>>, vector<1x1x256xi8>
    %19 = vector.shape_cast %18 : vector<1x1x256xi8> to vector<1x256xi8>
    %20 = arith.extsi %19 : vector<1x256xi8> to vector<1x256xi32>
    %c-100_i32 = arith.constant -100 : i32
    %21 = vector.broadcast %c-100_i32 : i32 to vector<1x256xi32>
    %22 = arith.cmpi ne, %20, %21 : vector<1x256xi32>
    %c0_19 = arith.constant 0 : index
    %c0_20 = arith.constant 0 : index
    %23 = vector.load %arg14[%c0_19, %c0_20] : memref<4x1xf32, #tpu.memory_space<vmem>>, vector<4x1xf32>
    %cst_21 = arith.constant dense<0.000000e+00> : vector<4xf32>
    %24 = vector.multi_reduction <add>, %4, %cst_21 [1] : vector<4x256xf32> to vector<4xf32>
    %25 = vector.shape_cast %24 : vector<4xf32> to vector<4x1xf32>
    %26 = arith.addf %23, %25 : vector<4x1xf32>
    %c0_22 = arith.constant 0 : index
    %c0_23 = arith.constant 0 : index
    %27 = vector.load %arg14[%c0_22, %c0_23] : memref<4x1xf32, #tpu.memory_space<vmem>>, vector<4x1xf32>
    tpu.vector_store %arg14[%c0_22, %c0_23], %26 {strides = array<i32>} : memref<4x1xf32, #tpu.memory_space<vmem>>, vector<4x1xf32>,
    %c0_24 = arith.constant 0 : index
    %c0_25 = arith.constant 0 : index
    %28 = vector.load %arg15[%c0_24, %c0_25] : memref<3x1xf32, #tpu.memory_space<vmem>>, vector<3x1xf32>
    %cst_26 = arith.constant dense<0.000000e+00> : vector<3xf32>
    %29 = vector.multi_reduction <add>, %6, %cst_26 [1] : vector<3x256xf32> to vector<3xf32>
    %30 = vector.shape_cast %29 : vector<3xf32> to vector<3x1xf32>
    %31 = arith.addf %28, %30 : vector<3x1xf32>
    %c0_27 = arith.constant 0 : index
    %c0_28 = arith.constant 0 : index
    %32 = vector.load %arg15[%c0_27, %c0_28] : memref<3x1xf32, #tpu.memory_space<vmem>>, vector<3x1xf32>
    tpu.vector_store %arg15[%c0_27, %c0_28], %31 {strides = array<i32>} : memref<3x1xf32, #tpu.memory_space<vmem>>, vector<3x1xf32>,
    %cst_29 = arith.constant dense<0xFF800000> : vector<256xf32>
    %33 = vector.multi_reduction <maximumf>, %14, %cst_29 [0] : vector<5x256xf32> to vector<256xf32>
    %34 = vector.shape_cast %33 : vector<256xf32> to vector<1x256xf32>
    %35 = vector.broadcast %34 : vector<1x256xf32> to vector<5x256xf32>
    %36 = arith.subf %14, %35 : vector<5x256xf32>
    %37 = math.exp %36 : vector<5x256xf32>
    %cst_30 = arith.constant dense<0.000000e+00> : vector<256xf32>
    %38 = vector.multi_reduction <add>, %37, %cst_30 [0] : vector<5x256xf32> to vector<256xf32>
    %39 = vector.shape_cast %38 : vector<256xf32> to vector<1x256xf32>
    %40 = math.log %39 : vector<1x256xf32>
    %41 = tpu.iota {dimensions = array<i32: 0>} : vector<5x256xi32>
    %42 = vector.broadcast %20 : vector<1x256xi32> to vector<5x256xi32>
    %43 = arith.cmpi eq, %41, %42 : vector<5x256xi32>
    %cst_31 = arith.constant 0.000000e+00 : f32
    %44 = vector.broadcast %cst_31 : f32 to vector<5x256xf32>
    %45 = arith.select %43, %36, %44 : vector<5x256xi1>, vector<5x256xf32>
    %cst_32 = arith.constant dense<0.000000e+00> : vector<256xf32>
    %46 = vector.multi_reduction <add>, %45, %cst_32 [0] : vector<5x256xf32> to vector<256xf32>
    %47 = vector.shape_cast %46 : vector<256xf32> to vector<1x256xf32>
    %c0_33 = arith.constant 0 : index
    %c0_34 = arith.constant 0 : index
    %48 = vector.load %arg16[%c0_33, %c0_34] : memref<1x256xf32, #tpu.memory_space<vmem>>, vector<1x256xf32>
    %49 = arith.subf %40, %47 : vector<1x256xf32>
    %cst_35 = arith.constant 0.000000e+00 : f32
    %50 = vector.broadcast %cst_35 : f32 to vector<1x256xf32>
    %51 = arith.select %22, %49, %50 : vector<1x256xi1>, vector<1x256xf32>
    %52 = arith.addf %48, %51 : vector<1x256xf32>
    %c0_36 = arith.constant 0 : index
    %c0_37 = arith.constant 0 : index
    %53 = vector.load %arg16[%c0_36, %c0_37] : memref<1x256xf32, #tpu.memory_space<vmem>>, vector<1x256xf32>
    tpu.vector_store %arg16[%c0_36, %c0_37], %52 {strides = array<i32>} : memref<1x256xf32, #tpu.memory_space<vmem>>, vector<1x256xf32>,
    %c0_38 = arith.constant 0 : index
    %c0_39 = arith.constant 0 : index
    %54 = vector.load %arg17[%c0_38, %c0_39] : memref<1x256xf32, #tpu.memory_space<vmem>>, vector<1x256xf32>
    %cst_40 = arith.constant 1.000000e+00 : f32
    %cst_41 = arith.constant 0.000000e+00 : f32
    %55 = vector.broadcast %cst_40 : f32 to vector<1x256xf32>
    %56 = vector.broadcast %cst_41 : f32 to vector<1x256xf32>
    %57 = arith.select %22, %55, %56 : vector<1x256xi1>, vector<1x256xf32>
    %58 = arith.addf %54, %57 : vector<1x256xf32>
    %c0_42 = arith.constant 0 : index
    %c0_43 = arith.constant 0 : index
    %59 = vector.load %arg17[%c0_42, %c0_43] : memref<1x256xf32, #tpu.memory_space<vmem>>, vector<1x256xf32>
    tpu.vector_store %arg17[%c0_42, %c0_43], %58 {strides = array<i32>} : memref<1x256xf32, #tpu.memory_space<vmem>>, vector<1x256xf32>,
    %c0_i32_44 = arith.constant 0 : i32
    %60 = arith.cmpi eq, %arg2, %c0_i32_44 : i32
    %61 = arith.extui %60 : i1 to i32
    %c0_i32_45 = arith.constant 0 : i32
    %62 = arith.cmpi ne, %61, %c0_i32_45 : i32
    scf.if %62 {
      %c0_46 = arith.constant 0 : index
      %c0_47 = arith.constant 0 : index
      %63 = vector.load %arg14[%c0_46, %c0_47] : memref<4x1xf32, #tpu.memory_space<vmem>>, vector<4x1xf32>
      %64 = vector.shape_cast %63 : vector<4x1xf32> to vector<1x1x4x1xf32>
      %c0_48 = arith.constant 0 : index
      %c0_49 = arith.constant 0 : index
      %c0_50 = arith.constant 0 : index
      %c0_51 = arith.constant 0 : index
      %65 = vector.load %arg10[%c0_48, %c0_49, %c0_50, %c0_51] : memref<1x1x4x1xf32, #tpu.memory_space<vmem>>, vector<1x1x4x1xf32>
      tpu.vector_store %arg10[%c0_48, %c0_49, %c0_50, %c0_51], %64 {strides = array<i32>} : memref<1x1x4x1xf32, #tpu.memory_space<vmem>>, vector<1x1x4x1xf32>,
      %c0_52 = arith.constant 0 : index
      %c0_53 = arith.constant 0 : index
      %66 = vector.load %arg15[%c0_52, %c0_53] : memref<3x1xf32, #tpu.memory_space<vmem>>, vector<3x1xf32>
      %67 = vector.shape_cast %66 : vector<3x1xf32> to vector<1x1x3x1xf32>
      %c0_54 = arith.constant 0 : index
      %c0_55 = arith.constant 0 : index
      %c0_56 = arith.constant 0 : index
      %c0_57 = arith.constant 0 : index
      %68 = vector.load %arg11[%c0_54, %c0_55, %c0_56, %c0_57] : memref<1x1x3x1xf32, #tpu.memory_space<vmem>>, vector<1x1x3x1xf32>
      tpu.vector_store %arg11[%c0_54, %c0_55, %c0_56, %c0_57], %67 {strides = array<i32>} : memref<1x1x3x1xf32, #tpu.memory_space<vmem>>, vector<1x1x3x1xf32>,
      %c0_58 = arith.constant 0 : index
      %c0_59 = arith.constant 0 : index
      %69 = vector.load %arg16[%c0_58, %c0_59] : memref<1x256xf32, #tpu.memory_space<vmem>>, vector<1x256xf32>
      %70 = vector.shape_cast %69 : vector<1x256xf32> to vector<1x1x256xf32>
      %cst_60 = arith.constant dense<0.000000e+00> : vector<1xf32>
      %71 = vector.multi_reduction <add>, %70, %cst_60 [1, 2] : vector<1x1x256xf32> to vector<1xf32>
      %72 = vector.shape_cast %71 : vector<1xf32> to vector<1x1x1xf32>
      %73 = vector.extract %72[0, 0, 0] : f32 from vector<1x1x1xf32>
      %74 = vector.broadcast %73 : f32 to vector<1x1xf32>
      %75 = vector.shape_cast %74 : vector<1x1xf32> to vector<1x1x1x1xf32>
      %c0_61 = arith.constant 0 : index
      %c0_62 = arith.constant 0 : index
      %c0_63 = arith.constant 0 : index
      %c0_64 = arith.constant 0 : index
      %76 = vector.load %arg12[%c0_61, %c0_62, %c0_63, %c0_64] : memref<1x1x1x1xf32, #tpu.memory_space<vmem>>, vector<1x1x1x1xf32>
      tpu.vector_store %arg12[%c0_61, %c0_62, %c0_63, %c0_64], %75 {strides = array<i32>} : memref<1x1x1x1xf32, #tpu.memory_space<vmem>>, vector<1x1x1x1xf32>,
      %c0_65 = arith.constant 0 : index
      %c0_66 = arith.constant 0 : index
      %77 = vector.load %arg17[%c0_65, %c0_66] : memref<1x256xf32, #tpu.memory_space<vmem>>, vector<1x256xf32>
      %78 = vector.shape_cast %77 : vector<1x256xf32> to vector<1x1x256xf32>
      %cst_67 = arith.constant dense<0.000000e+00> : vector<1xf32>
      %79 = vector.multi_reduction <add>, %78, %cst_67 [1, 2] : vector<1x1x256xf32> to vector<1xf32>
      %80 = vector.shape_cast %79 : vector<1xf32> to vector<1x1x1xf32>
      %81 = vector.extract %80[0, 0, 0] : f32 from vector<1x1x1xf32>
      %82 = vector.broadcast %81 : f32 to vector<1x1xf32>
      %83 = vector.shape_cast %82 : vector<1x1xf32> to vector<1x1x1x1xf32>
      %c0_68 = arith.constant 0 : index
      %c0_69 = arith.constant 0 : index
      %c0_70 = arith.constant 0 : index
      %c0_71 = arith.constant 0 : index
      %84 = vector.load %arg13[%c0_68, %c0_69, %c0_70, %c0_71] : memref<1x1x1x1xf32, #tpu.memory_space<vmem>>, vector<1x1x1x1xf32>
      tpu.vector_store %arg13[%c0_68, %c0_69, %c0_70, %c0_71], %83 {strides = array<i32>} : memref<1x1x1x1xf32, #tpu.memory_space<vmem>>, vector<1x1x1x1xf32>,
    } else {
    }
    return
  }
  func.func @transform_0(%arg0: i32, %arg1: i32, %arg2: i32) -> (i32, i32, i32) {
    %c1_i32 = arith.constant 1 : i32
    %0 = arith.muli %arg1, %c1_i32 : i32
    %1 = arith.addi %0, %arg2 : i32
    %c0_i32 = arith.constant 0 : i32
    %c0_i32_0 = arith.constant 0 : i32
    return %arg0, %c0_i32, %1 : i32, i32, i32
  }
  func.func @transform_1(%arg0: i32, %arg1: i32, %arg2: i32) -> (i32, i32, i32) {
    %c1_i32 = arith.constant 1 : i32
    %0 = arith.muli %arg1, %c1_i32 : i32
    %1 = arith.addi %0, %arg2 : i32
    %c0_i32 = arith.constant 0 : i32
    %c0_i32_0 = arith.constant 0 : i32
    return %arg0, %c0_i32, %1 : i32, i32, i32
  }
  func.func @transform_2(%arg0: i32, %arg1: i32, %arg2: i32) -> (i32, i32) {
    %c0_i32 = arith.constant 0 : i32
    %c0_i32_0 = arith.constant 0 : i32
    %c0_i32_1 = arith.constant 0 : i32
    return %c0_i32, %c0_i32_0 : i32, i32
  }
  func.func @transform_3(%arg0: i32, %arg1: i32, %arg2: i32) -> (i32, i32) {
    %c0_i32 = arith.constant 0 : i32
    %c0_i32_0 = arith.constant 0 : i32
    %c0_i32_1 = arith.constant 0 : i32
    return %c0_i32, %c0_i32_0 : i32, i32
  }
  func.func @transform_4(%arg0: i32, %arg1: i32, %arg2: i32) -> (i32, i32) {
    %c0_i32 = arith.constant 0 : i32
    %c0_i32_0 = arith.constant 0 : i32
    %c0_i32_1 = arith.constant 0 : i32
    return %c0_i32, %c0_i32_0 : i32, i32
  }
  func.func @transform_5(%arg0: i32, %arg1: i32, %arg2: i32) -> (i32, i32, i32) {
    %c1_i32 = arith.constant 1 : i32
    %0 = arith.muli %arg1, %c1_i32 : i32
    %1 = arith.addi %0, %arg2 : i32
    %c0_i32 = arith.constant 0 : i32
    %c0_i32_0 = arith.constant 0 : i32
    return %arg0, %c0_i32, %1 : i32, i32, i32
  }
  func.func @transform_6(%arg0: i32, %arg1: i32, %arg2: i32) -> (i32, i32, i32) {
    %c1_i32 = arith.constant 1 : i32
    %0 = arith.muli %arg1, %c1_i32 : i32
    %1 = arith.addi %0, %arg2 : i32
    %c0_i32 = arith.constant 0 : i32
    %c0_i32_0 = arith.constant 0 : i32
    return %arg0, %c0_i32, %1 : i32, i32, i32
  }
  func.func @transform_7(%arg0: i32, %arg1: i32, %arg2: i32) -> (i32, i32, i32, i32) {
    %c0_i32 = arith.constant 0 : i32
    %c0_i32_0 = arith.constant 0 : i32
    %c0_i32_1 = arith.constant 0 : i32
    return %arg0, %arg1, %c0_i32, %c0_i32_0 : i32, i32, i32, i32
  }
  func.func @transform_8(%arg0: i32, %arg1: i32, %arg2: i32) -> (i32, i32, i32, i32) {
    %c0_i32 = arith.constant 0 : i32
    %c0_i32_0 = arith.constant 0 : i32
    %c0_i32_1 = arith.constant 0 : i32
    return %arg0, %arg1, %c0_i32, %c0_i32_0 : i32, i32, i32, i32
  }
  func.func @transform_9(%arg0: i32, %arg1: i32, %arg2: i32) -> (i32, i32, i32, i32) {
    %c0_i32 = arith.constant 0 : i32
    %c0_i32_0 = arith.constant 0 : i32
    %c0_i32_1 = arith.constant 0 : i32
    return %arg0, %arg1, %c0_i32, %c0_i32_0 : i32, i32, i32, i32
  }
  func.func @transform_10(%arg0: i32, %arg1: i32, %arg2: i32) -> (i32, i32, i32, i32) {
    %c0_i32 = arith.constant 0 : i32
    %c0_i32_0 = arith.constant 0 : i32
    %c0_i32_1 = arith.constant 0 : i32
    return %arg0, %arg1, %c0_i32, %c0_i32_0 : i32, i32, i32, i32
  }
}

</mosaic_0001>

<llo_original>
// kernel: tpu_custom_call.1
$region0: #{tpu_custom_call.1}
  #allocation0 [shape = 'u32[]', space=smem, size = 0x4, offset = 0x4, fixed_abs, tag = 'smem constant byte address 0x4 - core index']
  #allocation1 [shape = 'u32[72,128]{1,0:T(1,128)}', space=vmem, size = 0x9000, scoped, tag = 'internal scratch']
  #allocation2 [shape = 'f32[4,1]{1,0:T(4,128)}', space=vmem, size = 0x800, scoped, tag = 'scratch operand']
  #allocation3 [shape = 'f32[3,1]{1,0:T(4,128)}', space=vmem, size = 0x800, scoped, tag = 'scratch operand']
  #allocation4 [shape = 'f32[1,256]{1,0:T(1,128)}', space=vmem, size = 0x400, scoped, tag = 'scratch operand']
  #allocation5 [shape = 'f32[1,256]{1,0:T(1,128)}', space=vmem, size = 0x400, scoped, tag = 'scratch operand']
  %s0 = inlined_call_operand.vmem [shape: f32[2,4,256], index: 0, kind: input, shape index: {}]
  %s1 = inlined_call_operand.vmem [shape: f32[2,3,256], index: 1, kind: input, shape index: {}]
  %s2 = inlined_call_operand.vmem [shape: f32[5,4], index: 2, kind: input, shape index: {}]
  %s3 = inlined_call_operand.vmem [shape: f32[5,3], index: 3, kind: input, shape index: {}]
  %s4 = inlined_call_operand.vmem [shape: f32[5,1], index: 4, kind: input, shape index: {}]
  %s5 = inlined_call_operand.vmem [shape: s8[2,1,256], index: 5, kind: input, shape index: {}]
  %s6 = inlined_call_operand.vmem [shape: f32[2,5,256], index: 6, kind: output, shape index: {0}]
  %s7 = inlined_call_operand.vmem [shape: f32[2,1,4,1], index: 7, kind: output, shape index: {1}]
  %s8 = inlined_call_operand.vmem [shape: f32[2,1,3,1], index: 8, kind: output, shape index: {2}]
  %s9 = inlined_call_operand.vmem [shape: f32[2,1,1,1], index: 9, kind: output, shape index: {3}]
  %s10 = inlined_call_operand.vmem [shape: f32[2,1,1,1], index: 10, kind: output, shape index: {4}]
  %11 = xla_tuple %s6, %s7, %s8, %s9, %s10
  %s12 = sld [smem:[#allocation0]]
  $region97: #{tpu_custom_call.1} parent=0
    _
  %s14 = ssub.s32 1, %s12
  %s15 = scalar_select 0, %s14, %s12
  loop: start=0, step=1, limit=4
  $region2: #{tpu_custom_call.1} parent=0 // loop_pre_header
    _
  $region3: #{tpu_custom_call.1} parent=0 // loop_header
    %s17 = sphi 0, %s21
    %p18 = scmp.ge.s32.totalorder %s17, 4
    %s24 = sphi 0, %s43
    %s25 = sphi 0, %s39
    %s26 = sphi 0, %s35
    %s27 = sphi 0, %s24
    %s28 = sphi 0, %s25
    %s29 = sphi 0, %s26
    %s30 = sphi 0, %s27
    %s31 = sphi 0, %s28
    %s32 = sphi 0, %s29
    %s50 = sphi 0, %s52
    %s53 = sphi 0, %s50
    %s54 = sphi 0, %s53
    %s70 = sphi 0, %s54
    %s80 = sphi 0, %s82
    %s83 = sphi 0, %s80
    %s84 = sphi 0, %s83
    %s100 = sphi 0, %s84
    %s104 = sphi 0, %s104
    %s106 = sphi 0, %s104
    %s107 = sphi 0, %s106
    %s121 = sphi 0, %s107
    %s125 = sphi 0, %s125
    %s127 = sphi 0, %s125
    %s128 = sphi 0, %s127
    %s142 = sphi 0, %s128
    %s146 = sphi 0, %s146
    %s148 = sphi 0, %s146
    %s149 = sphi 0, %s148
    %s163 = sphi 0, %s149
    %s173 = sphi 0, %s175
    %s176 = sphi 0, %s173
    %s177 = sphi 0, %s176
    %s193 = sphi 0, %s177
    %s203 = sphi 0, %s205
    %s206 = sphi 0, %s203
    %s207 = sphi 0, %s206
    %s223 = sphi 0, %s207
    %s231 = sphi 0, %s233
    %s234 = sphi 0, %s231
    %s235 = sphi 0, %s234
    %s251 = sphi 0, %s235
    %s259 = sphi 0, %s261
    %s262 = sphi 0, %s259
    %s263 = sphi 0, %s262
    %s279 = sphi 0, %s263
    %s287 = sphi 0, %s289
    %s290 = sphi 0, %s287
    %s291 = sphi 0, %s290
    %s307 = sphi 0, %s291
    %s315 = sphi 0, %s317
    %s318 = sphi 0, %s315
    %s319 = sphi 0, %s318
    %s335 = sphi 0, %s319
  $region4: #{tpu_custom_call.1} parent=0 // loop_header_branch
    %20 = sbr.rel (%p18) target = $region8
  $region5: #{tpu_custom_call.1} parent=0 // loop_body
    %s22 = ssub.s32 %s17, 1
    %s23 = ssub.s32 %s17, 2
    %s33 = sadd.s32 1, %s26
    %p34 = scmp.ge.s32.totalorder %s33, 1
    %s35 = scalar_select %p34, 0, %s33
    %s36 = sadd.s32 1, %s25
    %s37 = scalar_select %p34, %s36, %s25
    %p38 = scmp.ge.s32.totalorder %s37, 1
    %s39 = scalar_select %p38, 0, %s37
    %s40 = sadd.s32 1, %s24
    %s41 = scalar_select %p38, %s40, %s24
    %p42 = scmp.ge.s32.totalorder %s41, 2
    %s43 = scalar_select %p42, 0, %s41
    %s44 = sadd.s32 %s25, %s26
    %s45 = sadd.s32 %s39, %s35
    %s46 = ssub.s32 %s24, %s43
    %s47 = ssub.s32 %s44, %s45
    %s48 = sor.u32 %s46, %s47
    %p49 = scmp.eq.s32.totalorder %s48, 0
    %s51 = sadd.s32 %s50, 1
    %s52 = scalar_select %p49, %s50, %s51
    %p55 = pneg %p49
    %p56 = scmp.eq.s32.totalorder %s17, 1
    %p57 = por %p55, %p56
    %p58 = scmp.ne.s32.totalorder %s50, %s53
    %p59 = scmp.eq.s32.totalorder %s17, 0
    %p60 = por %p58, %p59
    %p61 = scmp.ne.s32.totalorder %s50, %s53
    %p62 = scmp.eq.s32.totalorder %s22, 1
    %p63 = por %p61, %p62
    %p64 = scmp.ne.s32.totalorder %s53, %s54
    %p65 = scmp.eq.s32.totalorder %s22, 0
    %p66 = por %p64, %p65
    %p67 = scmp.ne.s32.totalorder %s53, %s54
    %p68 = scmp.eq.s32.totalorder %s23, 1
    %p69 = por %p67, %p68
    %p71 = scmp.ne.s32.totalorder %s54, %s70
    %p72 = scmp.eq.s32.totalorder %s23, 0
    %p73 = por %p71, %p72
    %s74 = sadd.s32 %s25, %s26
    %s75 = sadd.s32 %s39, %s35
    %s76 = ssub.s32 %s24, %s43
    %s77 = ssub.s32 %s74, %s75
    %s78 = sor.u32 %s76, %s77
    %p79 = scmp.eq.s32.totalorder %s78, 0
    %s81 = sadd.s32 %s80, 1
    %s82 = scalar_select %p79, %s80, %s81
    %p85 = pneg %p79
    %p86 = scmp.eq.s32.totalorder %s17, 1
    %p87 = por %p85, %p86
    %p88 = scmp.ne.s32.totalorder %s80, %s83
    %p89 = scmp.eq.s32.totalorder %s17, 0
    %p90 = por %p88, %p89
    %p91 = scmp.ne.s32.totalorder %s80, %s83
    %p92 = scmp.eq.s32.totalorder %s22, 1
    %p93 = por %p91, %p92
    %p94 = scmp.ne.s32.totalorder %s83, %s84
    %p95 = scmp.eq.s32.totalorder %s22, 0
    %p96 = por %p94, %p95
    %p97 = scmp.ne.s32.totalorder %s83, %s84
    %p98 = scmp.eq.s32.totalorder %s23, 1
    %p99 = por %p97, %p98
    %p101 = scmp.ne.s32.totalorder %s84, %s100
    %p102 = scmp.eq.s32.totalorder %s23, 0
    %p103 = por %p101, %p102
    %s105 = sadd.s32 %s104, 1
    %p108 = scmp.eq.s32.totalorder %s17, 1
    %p109 = scmp.ne.s32.totalorder %s104, %s106
    %p110 = scmp.eq.s32.totalorder %s17, 0
    %p111 = por %p109, %p110
    %p112 = scmp.ne.s32.totalorder %s104, %s106
    %p113 = scmp.eq.s32.totalorder %s22, 1
    %p114 = por %p112, %p113
    %p115 = scmp.ne.s32.totalorder %s106, %s107
    %p116 = scmp.eq.s32.totalorder %s22, 0
    %p117 = por %p115, %p116
    %p118 = scmp.ne.s32.totalorder %s106, %s107
    %p119 = scmp.eq.s32.totalorder %s23, 1
    %p120 = por %p118, %p119
    %p122 = scmp.ne.s32.totalorder %s107, %s121
    %p123 = scmp.eq.s32.totalorder %s23, 0
    %p124 = por %p122, %p123
    %s126 = sadd.s32 %s125, 1
    %p129 = scmp.eq.s32.totalorder %s17, 1
    %p130 = scmp.ne.s32.totalorder %s125, %s127
    %p131 = scmp.eq.s32.totalorder %s17, 0
    %p132 = por %p130, %p131
    %p133 = scmp.ne.s32.totalorder %s125, %s127
    %p134 = scmp.eq.s32.totalorder %s22, 1
    %p135 = por %p133, %p134
    %p136 = scmp.ne.s32.totalorder %s127, %s128
    %p137 = scmp.eq.s32.totalorder %s22, 0
    %p138 = por %p136, %p137
    %p139 = scmp.ne.s32.totalorder %s127, %s128
    %p140 = scmp.eq.s32.totalorder %s23, 1
    %p141 = por %p139, %p140
    %p143 = scmp.ne.s32.totalorder %s128, %s142
    %p144 = scmp.eq.s32.totalorder %s23, 0
    %p145 = por %p143, %p144
    %s147 = sadd.s32 %s146, 1
    %p150 = scmp.eq.s32.totalorder %s17, 1
    %p151 = scmp.ne.s32.totalorder %s146, %s148
    %p152 = scmp.eq.s32.totalorder %s17, 0
    %p153 = por %p151, %p152
    %p154 = scmp.ne.s32.totalorder %s146, %s148
    %p155 = scmp.eq.s32.totalorder %s22, 1
    %p156 = por %p154, %p155
    %p157 = scmp.ne.s32.totalorder %s148, %s149
    %p158 = scmp.eq.s32.totalorder %s22, 0
    %p159 = por %p157, %p158
    %p160 = scmp.ne.s32.totalorder %s148, %s149
    %p161 = scmp.eq.s32.totalorder %s23, 1
    %p162 = por %p160, %p161
    %p164 = scmp.ne.s32.totalorder %s149, %s163
    %p165 = scmp.eq.s32.totalorder %s23, 0
    %p166 = por %p164, %p165
    %s167 = sadd.s32 %s25, %s26
    %s168 = sadd.s32 %s39, %s35
    %s169 = ssub.s32 %s24, %s43
    %s170 = ssub.s32 %s167, %s168
    %s171 = sor.u32 %s169, %s170
    %p172 = scmp.eq.s32.totalorder %s171, 0
    %s174 = sadd.s32 %s173, 1
    %s175 = scalar_select %p172, %s173, %s174
    %p178 = pneg %p172
    %p179 = scmp.eq.s32.totalorder %s17, 1
    %p180 = por %p178, %p179
    %p181 = scmp.ne.s32.totalorder %s173, %s176
    %p182 = scmp.eq.s32.totalorder %s17, 0
    %p183 = por %p181, %p182
    %p184 = scmp.ne.s32.totalorder %s173, %s176
    %p185 = scmp.eq.s32.totalorder %s22, 1
    %p186 = por %p184, %p185
    %p187 = scmp.ne.s32.totalorder %s176, %s177
    %p188 = scmp.eq.s32.totalorder %s22, 0
    %p189 = por %p187, %p188
    %p190 = scmp.ne.s32.totalorder %s176, %s177
    %p191 = scmp.eq.s32.totalorder %s23, 1
    %p192 = por %p190, %p191
    %p194 = scmp.ne.s32.totalorder %s177, %s193
    %p195 = scmp.eq.s32.totalorder %s23, 0
    %p196 = por %p194, %p195
    %s197 = sadd.s32 %s25, %s26
    %s198 = sadd.s32 %s39, %s35
    %s199 = ssub.s32 %s24, %s43
    %s200 = ssub.s32 %s197, %s198
    %s201 = sor.u32 %s199, %s200
    %p202 = scmp.eq.s32.totalorder %s201, 0
    %s204 = sadd.s32 %s203, 1
    %s205 = scalar_select %p202, %s203, %s204
    %p208 = pneg %p202
    %p209 = scmp.eq.s32.totalorder %s17, 1
    %p210 = por %p208, %p209
    %p211 = scmp.ne.s32.totalorder %s203, %s206
    %p212 = scmp.eq.s32.totalorder %s17, 0
    %p213 = por %p211, %p212
    %p214 = scmp.ne.s32.totalorder %s203, %s206
    %p215 = scmp.eq.s32.totalorder %s22, 1
    %p216 = por %p214, %p215
    %p217 = scmp.ne.s32.totalorder %s206, %s207
    %p218 = scmp.eq.s32.totalorder %s22, 0
    %p219 = por %p217, %p218
    %p220 = scmp.ne.s32.totalorder %s206, %s207
    %p221 = scmp.eq.s32.totalorder %s23, 1
    %p222 = por %p220, %p221
    %p224 = scmp.ne.s32.totalorder %s207, %s223
    %p225 = scmp.eq.s32.totalorder %s23, 0
    %p226 = por %p224, %p225
    %s227 = ssub.s32 %s24, %s43
    %s228 = ssub.s32 %s25, %s39
    %s229 = sor.u32 %s227, %s228
    %p230 = scmp.eq.s32.totalorder %s229, 0
    %s232 = sadd.s32 %s231, 1
    %s233 = scalar_select %p230, %s231, %s232
    %p236 = pneg %p230
    %p237 = scmp.eq.s32.totalorder %s17, 1
    %p238 = por %p236, %p237
    %p239 = scmp.ne.s32.totalorder %s231, %s234
    %p240 = scmp.eq.s32.totalorder %s17, 0
    %p241 = por %p239, %p240
    %p242 = scmp.ne.s32.totalorder %s231, %s234
    %p243 = scmp.eq.s32.totalorder %s22, 1
    %p244 = por %p242, %p243
    %p245 = scmp.ne.s32.totalorder %s234, %s235
    %p246 = scmp.eq.s32.totalorder %s22, 0
    %p247 = por %p245, %p246
    %p248 = scmp.ne.s32.totalorder %s234, %s235
    %p249 = scmp.eq.s32.totalorder %s23, 1
    %p250 = por %p248, %p249
    %p252 = scmp.ne.s32.totalorder %s235, %s251
    %p253 = scmp.eq.s32.totalorder %s23, 0
    %p254 = por %p252, %p253
    %s255 = ssub.s32 %s24, %s43
    %s256 = ssub.s32 %s25, %s39
    %s257 = sor.u32 %s255, %s256
    %p258 = scmp.eq.s32.totalorder %s257, 0
    %s260 = sadd.s32 %s259, 1
    %s261 = scalar_select %p258, %s259, %s260
    %p264 = pneg %p258
    %p265 = scmp.eq.s32.totalorder %s17, 1
    %p266 = por %p264, %p265
    %p267 = scmp.ne.s32.totalorder %s259, %s262
    %p268 = scmp.eq.s32.totalorder %s17, 0
    %p269 = por %p267, %p268
    %p270 = scmp.ne.s32.totalorder %s259, %s262
    %p271 = scmp.eq.s32.totalorder %s22, 1
    %p272 = por %p270, %p271
    %p273 = scmp.ne.s32.totalorder %s262, %s263
    %p274 = scmp.eq.s32.totalorder %s22, 0
    %p275 = por %p273, %p274
    %p276 = scmp.ne.s32.totalorder %s262, %s263
    %p277 = scmp.eq.s32.totalorder %s23, 1
    %p278 = por %p276, %p277
    %p280 = scmp.ne.s32.totalorder %s263, %s279
    %p281 = scmp.eq.s32.totalorder %s23, 0
    %p282 = por %p280, %p281
    %s283 = ssub.s32 %s24, %s43
    %s284 = ssub.s32 %s25, %s39
    %s285 = sor.u32 %s283, %s284
    %p286 = scmp.eq.s32.totalorder %s285, 0
    %s288 = sadd.s32 %s287, 1
    %s289 = scalar_select %p286, %s287, %s288
    %p292 = pneg %p286
    %p293 = scmp.eq.s32.totalorder %s17, 1
    %p294 = por %p292, %p293
    %p295 = scmp.ne.s32.totalorder %s287, %s290
    %p296 = scmp.eq.s32.totalorder %s17, 0
    %p297 = por %p295, %p296
    %p298 = scmp.ne.s32.totalorder %s287, %s290
    %p299 = scmp.eq.s32.totalorder %s22, 1
    %p300 = por %p298, %p299
    %p301 = scmp.ne.s32.totalorder %s290, %s291
    %p302 = scmp.eq.s32.totalorder %s22, 0
    %p303 = por %p301, %p302
    %p304 = scmp.ne.s32.totalorder %s290, %s291
    %p305 = scmp.eq.s32.totalorder %s23, 1
    %p306 = por %p304, %p305
    %p308 = scmp.ne.s32.totalorder %s291, %s307
    %p309 = scmp.eq.s32.totalorder %s23, 0
    %p310 = por %p308, %p309
    %s311 = ssub.s32 %s24, %s43
    %s312 = ssub.s32 %s25, %s39
    %s313 = sor.u32 %s311, %s312
    %p314 = scmp.eq.s32.totalorder %s313, 0
    %s316 = sadd.s32 %s315, 1
    %s317 = scalar_select %p314, %s315, %s316
    %p320 = pneg %p314
    %p321 = scmp.eq.s32.totalorder %s17, 1
    %p322 = por %p320, %p321
    %p323 = scmp.ne.s32.totalorder %s315, %s318
    %p324 = scmp.eq.s32.totalorder %s17, 0
    %p325 = por %p323, %p324
    %p326 = scmp.ne.s32.totalorder %s315, %s318
    %p327 = scmp.eq.s32.totalorder %s22, 1
    %p328 = por %p326, %p327
    %p329 = scmp.ne.s32.totalorder %s318, %s319
    %p330 = scmp.eq.s32.totalorder %s22, 0
    %p331 = por %p329, %p330
    %p332 = scmp.ne.s32.totalorder %s318, %s319
    %p333 = scmp.eq.s32.totalorder %s23, 1
    %p334 = por %p332, %p333
    %p336 = scmp.ne.s32.totalorder %s319, %s335
    %p337 = scmp.eq.s32.totalorder %s23, 0
    %p338 = por %p336, %p337
    %p339 = scmp.le.s32.totalorder 1, %s17
    %p340 = scmp.lt.s32.totalorder %s17, 3
    %p341 = pnand %p339, %p340
    %p342 = pneg %p341
    // Predicated region
    $region9: #{tpu_custom_call.1} parent=5 // pred_check
      _
    $region10: #{tpu_custom_call.1} parent=5 // pred_check_branch
      %344 = sbr.rel (%p341) target = $region12
    $region11: #{tpu_custom_call.1} parent=5 // pred_region
      %s345 = ssub.s32 %s17, 1
      // Predicated region
      $region13: #{tpu_custom_call.1} parent=11 // pred_check
        %p346 = pneg %p117
      $region14: #{tpu_custom_call.1} parent=11 // pred_check_branch
        %348 = sbr.rel (%p346) target = $region16
      $region15: #{tpu_custom_call.1} parent=11 // pred_region
        _
      $region16: #{tpu_custom_call.1} parent=11 // pred_fallthru
        _
      // Predicated region
      $region17: #{tpu_custom_call.1} parent=11 // pred_check
        %p349 = pneg %p138
      $region18: #{tpu_custom_call.1} parent=11 // pred_check_branch
        %351 = sbr.rel (%p349) target = $region20
      $region19: #{tpu_custom_call.1} parent=11 // pred_region
        _
      $region20: #{tpu_custom_call.1} parent=11 // pred_fallthru
        _
      // Predicated region
      $region21: #{tpu_custom_call.1} parent=11 // pred_check
        %p352 = pneg %p159
      $region22: #{tpu_custom_call.1} parent=11 // pred_check_branch
        %354 = sbr.rel (%p352) target = $region24
      $region23: #{tpu_custom_call.1} parent=11 // pred_region
        _
      $region24: #{tpu_custom_call.1} parent=11 // pred_fallthru
        _
    $region12: #{tpu_custom_call.1} parent=5 // pred_fallthru
      _
    %p355 = scmp.lt.s32.totalorder %s17, 2
    // Predicated region
    $region25: #{tpu_custom_call.1} parent=5 // pred_check
      %p356 = pneg %p355
    $region26: #{tpu_custom_call.1} parent=5 // pred_check_branch
      %358 = sbr.rel (%p356) target = $region28
    $region27: #{tpu_custom_call.1} parent=5 // pred_region
      // Predicated region
      $region29: #{tpu_custom_call.1} parent=27 // pred_check
        %p359 = pneg %p60
      $region30: #{tpu_custom_call.1} parent=27 // pred_check_branch
        %361 = sbr.rel (%p359) target = $region32
      $region31: #{tpu_custom_call.1} parent=27 // pred_region
        %s362 = sadd.s32 %s25, %s26
        %s363 = smul.u32 2, %s362
        %p364 = scmp.lt.s32.totalorder %s24, 1
        %s365 = scalar_select %p364, %s24, 1
        %p366 = scmp.lt.s32.totalorder %s363, 1
        %s367 = scalar_select %p366, %s363, 1
        %s368 = smul.addr %s365, 2
        %s369 = sadd.s32 %s367, %s368
        %s370 = smul.addr %s369, 4
        %s371 = scalar_lea.vmem %s0, %s370
        %s372 = sadd.s32 %s25, %s26
        %s373 = smul.u32 2, %s372
      $region32: #{tpu_custom_call.1} parent=27 // pred_fallthru
        _
      // Predicated region
      $region33: #{tpu_custom_call.1} parent=27 // pred_check
        %p374 = pneg %p90
      $region34: #{tpu_custom_call.1} parent=27 // pred_check_branch
        %376 = sbr.rel (%p374) target = $region36
      $region35: #{tpu_custom_call.1} parent=27 // pred_region
        %s377 = sadd.s32 %s25, %s26
        %s378 = smul.u32 2, %s377
        %p379 = scmp.lt.s32.totalorder %s24, 1
        %s380 = scalar_select %p379, %s24, 1
        %p381 = scmp.lt.s32.totalorder %s378, 1
        %s382 = scalar_select %p381, %s378, 1
        %s383 = smul.addr %s380, 2
        %s384 = sadd.s32 %s382, %s383
        %s385 = smul.addr %s384, 4
        %s386 = scalar_lea.vmem %s1, %s385
        %s387 = sadd.s32 %s25, %s26
        %s388 = smul.u32 2, %s387
      $region36: #{tpu_custom_call.1} parent=27 // pred_fallthru
        _
      // Predicated region
      $region37: #{tpu_custom_call.1} parent=27 // pred_check
        %p389 = pneg %p183
      $region38: #{tpu_custom_call.1} parent=27 // pred_check_branch
        %391 = sbr.rel (%p389) target = $region40
      $region39: #{tpu_custom_call.1} parent=27 // pred_region
        %s392 = sadd.s32 %s25, %s26
        %s393 = smul.u32 2, %s392
        %p394 = scmp.lt.s32.totalorder %s24, 1
        %s395 = scalar_select %p394, %s24, 1
        %p396 = scmp.lt.s32.totalorder %s393, 1
        %s397 = scalar_select %p396, %s393, 1
        %s398 = smul.addr %s395, 2
        %s399 = sadd.s32 %s397, %s398
        %s400 = scalar_lea.vmem %s5, %s399
        %s401 = sadd.s32 %s25, %s26
        %s402 = smul.u32 2, %s401
      $region40: #{tpu_custom_call.1} parent=27 // pred_fallthru
        _
    $region28: #{tpu_custom_call.1} parent=5 // pred_fallthru
      _
    %p403 = scmp.le.s32.totalorder 1, %s17
    %p404 = scmp.lt.s32.totalorder %s17, 3
    %p405 = pnand %p403, %p404
    %p406 = pneg %p405
    // Predicated region
    $region41: #{tpu_custom_call.1} parent=5 // pred_check
      _
    $region42: #{tpu_custom_call.1} parent=5 // pred_check_branch
      %408 = sbr.rel (%p405) target = $region44
    $region43: #{tpu_custom_call.1} parent=5 // pred_region
      %s409 = ssub.s32 %s17, 1
      %s410 = sadd.s32 %s28, %s29
      %s411 = smul.u32 2, %s410
      %p412 = scmp.lt.s32.totalorder %s27, 1
      %s413 = scalar_select %p412, %s27, 1
      %p414 = scmp.lt.s32.totalorder %s411, 1
      %s415 = scalar_select %p414, %s411, 1
      %s416 = smul.addr %s413, 2
      %s417 = sadd.s32 %s415, %s416
      %s418 = smul.addr %s417, 4
      %s419 = scalar_lea.vmem %s0, %s418
      %p420 = pneg %p66
      %p421 = pneg %p63
      %s422 = sadd.s32 %s28, %s29
      %s423 = smul.u32 2, %s422
      %p424 = scmp.lt.s32.totalorder %s27, 1
      %s425 = scalar_select %p424, %s27, 1
      %p426 = scmp.lt.s32.totalorder %s423, 1
      %s427 = scalar_select %p426, %s423, 1
      %s428 = smul.addr %s425, 2
      %s429 = sadd.s32 %s427, %s428
      %s430 = smul.addr %s429, 4
      %s431 = scalar_lea.vmem %s1, %s430
      %p432 = pneg %p96
      %p433 = pneg %p93
      %p434 = pneg %p117
      %p435 = pneg %p114
      %p436 = pneg %p138
      %p437 = pneg %p135
      %p438 = pneg %p159
      %p439 = pneg %p156
      %s440 = sadd.s32 %s28, %s29
      %s441 = smul.u32 2, %s440
      %p442 = scmp.lt.s32.totalorder %s27, 1
      %s443 = scalar_select %p442, %s27, 1
      %p444 = scmp.lt.s32.totalorder %s441, 1
      %s445 = scalar_select %p444, %s441, 1
      %s446 = smul.addr %s443, 2
      %s447 = sadd.s32 %s445, %s446
      %s448 = scalar_lea.vmem %s5, %s447
      %p449 = pneg %p189
      %p450 = pneg %p186
      %p451 = pneg %p219
      %p452 = pneg %p216
      %s453 = sadd.s32 %s28, %s29
      %s454 = smul.u32 2, %s453
      %p455 = scmp.lt.s32.totalorder %s27, 1
      %s456 = scalar_select %p455, %s27, 1
      %p457 = scmp.lt.s32.totalorder %s454, 1
      %s458 = scalar_select %p457, %s454, 1
      %s459 = smul.addr %s456, 2
      %s460 = sadd.s32 %s458, %s459
      %s461 = smul.addr %s460, 8
      %s462 = scalar_lea.vmem %s6, %s461
      %p463 = pneg %p247
      %p464 = pneg %p244
      %p465 = scmp.lt.s32.totalorder %s27, 1
      %s466 = scalar_select %p465, %s27, 1
      %p467 = scmp.lt.s32.totalorder %s28, 0
      %s468 = scalar_select %p467, %s28, 0
      %s469 = sadd.s32 %s468, %s466
      %s470 = smul.addr %s469, 4
      %s471 = scalar_lea.vmem %s7, %s470
      %p472 = pneg %p275
      %p473 = pneg %p272
      %p474 = scmp.lt.s32.totalorder %s27, 1
      %s475 = scalar_select %p474, %s27, 1
      %p476 = scmp.lt.s32.totalorder %s28, 0
      %s477 = scalar_select %p476, %s28, 0
      %s478 = sadd.s32 %s477, %s475
      %s479 = smul.addr %s478, 4
      %s480 = scalar_lea.vmem %s8, %s479
      %p481 = pneg %p303
      %p482 = pneg %p300
      %p483 = scmp.lt.s32.totalorder %s27, 1
      %s484 = scalar_select %p483, %s27, 1
      %p485 = scmp.lt.s32.totalorder %s28, 0
      %s486 = scalar_select %p485, %s28, 0
      %s487 = sadd.s32 %s486, %s484
      %s488 = scalar_lea.vmem %s9, %s487
      %p489 = pneg %p331
      %p490 = pneg %p328
      %p491 = scmp.lt.s32.totalorder %s27, 1
      %s492 = scalar_select %p491, %s27, 1
      %p493 = scmp.lt.s32.totalorder %s28, 0
      %s494 = scalar_select %p493, %s28, 0
      %s495 = sadd.s32 %s494, %s492
      %s496 = scalar_lea.vmem %s10, %s495
      %s497 = sadd.s32 %s28, %s29
      %s498 = smul.u32 2, %s497
      %p499 = scmp.lt.s32.totalorder %s27, 1
      %s500 = scalar_select %p499, %s27, 1
      %p501 = scmp.lt.s32.totalorder %s498, 1
      %s502 = scalar_select %p501, %s498, 1
      %s503 = smul.addr %s500, 2
      %s504 = sadd.s32 %s502, %s503
      %s505 = smul.addr %s504, 4
      %s506 = scalar_lea.vmem %s0, %s505
      %s507 = sadd.s32 %s28, %s29
      %s508 = smul.u32 2, %s507
      %s509 = sadd.s32 %s28, %s29
      %s510 = smul.u32 2, %s509
      %p511 = scmp.lt.s32.totalorder %s27, 1
      %s512 = scalar_select %p511, %s27, 1
      %p513 = scmp.lt.s32.totalorder %s510, 1
      %s514 = scalar_select %p513, %s510, 1
      %s515 = smul.addr %s512, 2
      %s516 = sadd.s32 %s514, %s515
      %s517 = smul.addr %s516, 4
      %s518 = scalar_lea.vmem %s1, %s517
      %s519 = sadd.s32 %s28, %s29
      %s520 = smul.u32 2, %s519
      %s521 = sadd.s32 %s28, %s29
      %s522 = smul.u32 2, %s521
      %p523 = scmp.lt.s32.totalorder %s27, 1
      %s524 = scalar_select %p523, %s27, 1
      %p525 = scmp.lt.s32.totalorder %s522, 1
      %s526 = scalar_select %p525, %s522, 1
      %s527 = smul.addr %s524, 2
      %s528 = sadd.s32 %s526, %s527
      %s529 = scalar_lea.vmem %s5, %s528
      %s530 = sadd.s32 %s28, %s29
      %s531 = smul.u32 2, %s530
      %s532 = sadd.s32 %s28, %s29
      %s533 = smul.u32 2, %s532
      %p534 = scmp.lt.s32.totalorder %s27, 1
      %s535 = scalar_select %p534, %s27, 1
      %p536 = scmp.lt.s32.totalorder %s533, 1
      %s537 = scalar_select %p536, %s533, 1
      %s538 = smul.addr %s535, 2
      %s539 = sadd.s32 %s537, %s538
      %s540 = smul.addr %s539, 8
      %s541 = scalar_lea.vmem %s6, %s540
      %s542 = sadd.s32 %s28, %s29
      %s543 = smul.u32 2, %s542
      %p544 = scmp.lt.s32.totalorder %s27, 1
      %s545 = scalar_select %p544, %s27, 1
      %p546 = scmp.lt.s32.totalorder %s28, 0
      %s547 = scalar_select %p546, %s28, 0
      %s548 = sadd.s32 %s547, %s545
      %s549 = smul.addr %s548, 4
      %s550 = scalar_lea.vmem %s7, %s549
      %p551 = scmp.lt.s32.totalorder %s27, 1
      %s552 = scalar_select %p551, %s27, 1
      %p553 = scmp.lt.s32.totalorder %s28, 0
      %s554 = scalar_select %p553, %s28, 0
      %s555 = sadd.s32 %s554, %s552
      %s556 = smul.addr %s555, 4
      %s557 = scalar_lea.vmem %s8, %s556
      %p558 = scmp.lt.s32.totalorder %s27, 1
      %s559 = scalar_select %p558, %s27, 1
      %p560 = scmp.lt.s32.totalorder %s28, 0
      %s561 = scalar_select %p560, %s28, 0
      %s562 = sadd.s32 %s561, %s559
      %s563 = scalar_lea.vmem %s9, %s562
      %p564 = scmp.lt.s32.totalorder %s27, 1
      %s565 = scalar_select %p564, %s27, 1
      %p566 = scmp.lt.s32.totalorder %s28, 0
      %s567 = scalar_select %p566, %s28, 0
      %s568 = sadd.s32 %s567, %s565
      %s569 = scalar_lea.vmem %s10, %s568
      %p570 = scmp.eq.s32.totalorder %s29, 0
      // Predicated region
      $region45: #{tpu_custom_call.1} parent=43 // pred_check
        %p571 = pneg %p570
      $region46: #{tpu_custom_call.1} parent=43 // pred_check_branch
        %573 = sbr.rel (%p571) target = $region48
      $region47: #{tpu_custom_call.1} parent=43 // pred_region
        %vm574 = vcmask 3072
        %575 = vst.msk [vmem:[#allocation2] sm:$0xf] %vm574, 0.0
        %vm576 = vcmask 2048
        %577 = vst.msk [vmem:[#allocation3] sm:$0x7] %vm576, 0.0
        %v578 = vlaneseq
        %vm579 = vcmp.ge.s32.totalorder %v578, 0
        %vm580 = vcmp.lt.s32.totalorder %v578, 256
        %vm581 = vmand %vm579, %vm580
        %582 = vst.msk [vmem:[#allocation4] sm:$0x3] %vm581, 0.0
        %583 = vst.msk [vmem:[#allocation5] sm:$0x3] %vm581, 0.0
      $region48: #{tpu_custom_call.1} parent=43 // pred_fallthru
        _
      %v584 = vld [vmem:[%s506] sm:$0xff]
      %v585 = vld [vmem:[%s518] sm:$0x77]
      %v586 = vld [vmem:[%s2] sm:$0x1f]
      %v587 = vld [vmem:[%s3] sm:$0x1f]
      %589 = vst [vmem:[#allocation1] ss:$2 sm:$0xff] %v585
      %v590 = vld.sshfl [vmem:[#allocation1] sm:$0xff pattern:$0x75316420]
      %v591 = vld.sshfl [vmem:[#allocation1 + $0x8] sm:$0xff pattern:$0x75316420]
      %vm592 = vcmask 23552
      %v594 = vsel %vm592, %v587, 0
      %vm596 = vcmask 1042432
      %v597 = vsel %vm596, %v590, 0
      %v599 = vsel %vm596, %v591, 0
      %601 = vmatpush.msra.mxu0 0.0
      %602 = vmatpush.msra.mxu0 0.0
      %603 = vmatpush.msra.mxu0 0.0
      %604 = vmatpush.msra.mxu0 0.0
      %605 = vmatpush.msra.mxu0 0.0
      %606 = vmatpush.msra.mxu0 0.0
      %607 = vmatpush.msra.mxu0 0.0
      %608 = vmatpush.msra.mxu0 0.0
      %609 = vmatpush.msra.mxu0 0.0
      %610 = vmatpush.msra.mxu0 0.0
      %611 = vmatpush.msra.mxu0 0.0
      %612 = vmatpush.msra.mxu0 0.0
      %613 = vmatpush.msra.mxu0 0.0
      %614 = vmatpush.msra.mxu0 0.0
      %615 = vmatpush.msra.mxu0 0.0
      %616 = vmatpush.msra.mxu0 %v597
      %617 = vmatmul.f32.gmra.mxu0 %v594
      %v618 = vpop.f32.mrf.mxu0
      %v619 = vadd.f32 0.0, %v618
      %620 = vdwg.mxu0
      %621 = vmatpush.msra.mxu0 0.0
      %622 = vmatpush.msra.mxu0 0.0
      %623 = vmatpush.msra.mxu0 0.0
      %624 = vmatpush.msra.mxu0 0.0
      %625 = vmatpush.msra.mxu0 0.0
      %626 = vmatpush.msra.mxu0 0.0
      %627 = vmatpush.msra.mxu0 0.0
      %628 = vmatpush.msra.mxu0 0.0
      %629 = vmatpush.msra.mxu0 0.0
      %630 = vmatpush.msra.mxu0 0.0
      %631 = vmatpush.msra.mxu0 0.0
      %632 = vmatpush.msra.mxu0 0.0
      %633 = vmatpush.msra.mxu0 0.0
      %634 = vmatpush.msra.mxu0 0.0
      %635 = vmatpush.msra.mxu0 0.0
      %636 = vmatpush.msra.mxu0 %v599
      %637 = vmatmul.f32.gmra.mxu0 %v594
      %v638 = vpop.f32.mrf.mxu0
      %v639 = vadd.f32 0.0, %v638
      %640 = vdwg.mxu0
      %642 = vst [vmem:[#allocation1] ss:$2 sm:$0xff] %v584
      %v643 = vld.sshfl [vmem:[#allocation1] sm:$0xff pattern:$0x75316420]
      %v644 = vld.sshfl [vmem:[#allocation1 + $0x8] sm:$0xff pattern:$0x75316420]
      %vm645 = vcmask 31744
      %v647 = vsel %vm645, %v586, 0
      %vm649 = vcmask 1043456
      %v650 = vsel %vm649, %v643, 0
      %v652 = vsel %vm649, %v644, 0
      %654 = vmatpush.msra.mxu0 0.0
      %655 = vmatpush.msra.mxu0 0.0
      %656 = vmatpush.msra.mxu0 0.0
      %657 = vmatpush.msra.mxu0 0.0
      %658 = vmatpush.msra.mxu0 0.0
      %659 = vmatpush.msra.mxu0 0.0
      %660 = vmatpush.msra.mxu0 0.0
      %661 = vmatpush.msra.mxu0 0.0
      %662 = vmatpush.msra.mxu0 0.0
      %663 = vmatpush.msra.mxu0 0.0
      %664 = vmatpush.msra.mxu0 0.0
      %665 = vmatpush.msra.mxu0 0.0
      %666 = vmatpush.msra.mxu0 0.0
      %667 = vmatpush.msra.mxu0 0.0
      %668 = vmatpush.msra.mxu0 0.0
      %669 = vmatpush.msra.mxu0 %v650
      %670 = vmatmul.f32.gmra.mxu0 %v647
      %v671 = vpop.f32.mrf.mxu0
      %v672 = vadd.f32 %v619, %v671
      %673 = vdwg.mxu0
      %674 = vmatpush.msra.mxu0 0.0
      %675 = vmatpush.msra.mxu0 0.0
      %676 = vmatpush.msra.mxu0 0.0
      %677 = vmatpush.msra.mxu0 0.0
      %678 = vmatpush.msra.mxu0 0.0
      %679 = vmatpush.msra.mxu0 0.0
      %680 = vmatpush.msra.mxu0 0.0
      %681 = vmatpush.msra.mxu0 0.0
      %682 = vmatpush.msra.mxu0 0.0
      %683 = vmatpush.msra.mxu0 0.0
      %684 = vmatpush.msra.mxu0 0.0
      %685 = vmatpush.msra.mxu0 0.0
      %686 = vmatpush.msra.mxu0 0.0
      %687 = vmatpush.msra.mxu0 0.0
      %688 = vmatpush.msra.mxu0 0.0
      %689 = vmatpush.msra.mxu0 %v652
      %690 = vmatmul.f32.gmra.mxu0 %v647
      %v691 = vpop.f32.mrf.mxu0
      %v692 = vadd.f32 %v639, %v691
      %693 = vdwg.mxu0
      %v694 = vld [vmem:[%s4] sm:$0x1f]
      %696 = vset.pattern.permute.xlu0 0
      %697 = vperm.xlu0 %696, %v694
      %v698 = vpop.permute.xlu0 %697
      %v700 = vadd.f32 %v672, %v698
      %v701 = vadd.f32 %v692, %v698
      %702 = vst [vmem:[%s541] sm:$0x1f] %v700
      %703 = vst [vmem:[%s541 + $0x8] sm:$0x1f] %v701
      %v704 = vld [vmem:[%s529] sm:$0x3]
      %v705 = vunpack.c.0.s8 %v704
      %vm706 = vcmp.ne.s32.totalorder %v705, 4294967196
      %v707 = vld [vmem:[#allocation2] sm:$0xf]
      %708 = vst [vmem:[#allocation1] ss:$2 sm:$0xff] %v584
      %v709 = vld.sshfl [vmem:[#allocation1] sm:$0xff pattern:$0x75316420]
      %v710 = vld.sshfl [vmem:[#allocation1 + $0x8] sm:$0xff pattern:$0x75316420]
      %v713 = vsel %vm649, %v709, 0.0
      %v714 = vsel %vm649, %v710, 0.0
      %v715 = vadd.f32 %v713, %v714
      %716 = vadd.xlane.f32.xlu0 %v715
      %v717 = vpop.xlane.xlu0 %716
      %v718 = vadd.f32 %v707, %v717
      %vm719 = vcmask 3072
      %720 = vst.msk [vmem:[#allocation2] sm:$0xf] %vm719, %v718
      %v721 = vld [vmem:[#allocation3] sm:$0x7]
      %722 = vst [vmem:[#allocation1] ss:$2 sm:$0xff] %v585
      %v723 = vld.sshfl [vmem:[#allocation1] sm:$0xff pattern:$0x75316420]
      %v724 = vld.sshfl [vmem:[#allocation1 + $0x8] sm:$0xff pattern:$0x75316420]
      %v727 = vsel %vm596, %v723, 0.0
      %v728 = vsel %vm596, %v724, 0.0
      %v729 = vadd.f32 %v727, %v728
      %730 = vadd.xlane.f32.xlu0 %v729
      %v731 = vpop.xlane.xlu0 %730
      %v732 = vadd.f32 %v721, %v731
      %vm733 = vcmask 2048
      %734 = vst.msk [vmem:[#allocation3] sm:$0x7] %vm733, %v732
      %vm735 = vcmask 1044480
      %v736 = vsel %vm735, %v700, -inf
      %v737 = vrot.slane %v736, 4
      %v738 = vmax.f32 %v736, %v737
      %v739 = vrot.slane %v738, 2
      %v740 = vmax.f32 %v738, %v739
      %v741 = vrot.slane %v740, 1
      %v742 = vmax.f32 %v740, %v741
      %v743 = vsel %vm735, %v701, -inf
      %v744 = vrot.slane %v743, 4
      %v745 = vmax.f32 %v743, %v744
      %v746 = vrot.slane %v745, 2
      %v747 = vmax.f32 %v745, %v746
      %v748 = vrot.slane %v747, 1
      %v749 = vmax.f32 %v747, %v748
      %v750 = vsub.f32 %v700, %v742
      %v751 = vsub.f32 %v701, %v749
      %v752 = vmul.f32 %v750, 1.442695
      %v753 = vpow.pop %v752
      %v754 = vmul.f32 %v751, 1.442695
      %v755 = vpow.pop %v754
      %v756 = vsel %vm735, %v753, 0.0
      %v757 = vrot.slane %v756, 4
      %v758 = vadd.f32 %v756, %v757
      %v759 = vrot.slane %v758, 2
      %v760 = vadd.f32 %v758, %v759
      %v761 = vrot.slane %v760, 1
      %v762 = vadd.f32 %v760, %v761
      %v763 = vsel %vm735, %v755, 0.0
      %v764 = vrot.slane %v763, 4
      %v765 = vadd.f32 %v763, %v764
      %v766 = vrot.slane %v765, 2
      %v767 = vadd.f32 %v765, %v766
      %v768 = vrot.slane %v767, 1
      %v769 = vadd.f32 %v767, %v768
      %v770 = vlog2.pop %v762
      %v771 = vmul.f32 %v770, 0.6931472
      %v772 = vlog2.pop %v769
      %v773 = vmul.f32 %v772, 0.6931472
      %v774 = vlaneseq
      %v775 = vshrl.u32 %v774, 7
      %v776 = vperm.slane %v705, 0
      %v777 = vperm.slane %v705, 4
      %v778 = vperm.slane %v776, 0
      %v779 = vperm.slane %v777, 0
      %vm780 = vcmp.eq.s32.totalorder %v775, %v778
      %vm781 = vcmp.eq.s32.totalorder %v775, %v779
      %v782 = vsel %vm780, %v750, 0.0
      %v783 = vsel %vm781, %v751, 0.0
      %v784 = vsel %vm735, %v782, 0.0
      %v785 = vrot.slane %v784, 4
      %v786 = vadd.f32 %v784, %v785
      %v787 = vrot.slane %v786, 2
      %v788 = vadd.f32 %v786, %v787
      %v789 = vrot.slane %v788, 1
      %v790 = vadd.f32 %v788, %v789
      %v791 = vsel %vm735, %v783, 0.0
      %v792 = vrot.slane %v791, 4
      %v793 = vadd.f32 %v791, %v792
      %v794 = vrot.slane %v793, 2
      %v795 = vadd.f32 %v793, %v794
      %v796 = vrot.slane %v795, 1
      %v797 = vadd.f32 %v795, %v796
      %v798 = vld [vmem:[#allocation4] sm:$0x3]
      %v799 = vsub.f32 %v771, %v790
      %v800 = vsub.f32 %v773, %v797
      %v803 = vrot.slane %v800, 4
      %v804 = vsel %vm649, %v799, %v803
      %v806 = vsel %vm706, %v804, 0.0
      %v808 = vrot.slane %v806, 3
      %vm809 = vcmask 1040384
      %v810 = vsel %vm809, %v806, %v808
      %v812 = vadd.f32 %v798, %v810
      %v813 = vlaneseq
      %vm814 = vcmp.ge.s32.totalorder %v813, 0
      %vm815 = vcmp.lt.s32.totalorder %v813, 256
      %vm816 = vmand %vm814, %vm815
      %817 = vst.msk [vmem:[#allocation4] sm:$0x3] %vm816, %v812
      %v818 = vld [vmem:[#allocation5] sm:$0x3]
      %v819 = vsel %vm706, 1.0, 0.0
      %v821 = vrot.slane %v819, 3
      %v822 = vsel %vm809, %v819, %v821
      %v824 = vadd.f32 %v818, %v822
      %825 = vst.msk [vmem:[#allocation5] sm:$0x3] %vm816, %v824
      // Predicated region
      $region49: #{tpu_custom_call.1} parent=43 // pred_check
        %p826 = pneg %p570
      $region50: #{tpu_custom_call.1} parent=43 // pred_check_branch
        %828 = sbr.rel (%p826) target = $region52
      $region51: #{tpu_custom_call.1} parent=43 // pred_region
        %v829 = vld [vmem:[#allocation2] sm:$0xf]
        %830 = vst.msk [vmem:[%s550] sm:$0xf] %vm719, %v829
        %v831 = vld [vmem:[#allocation3] sm:$0x7]
        %832 = vst.msk [vmem:[%s557] sm:$0x7] %vm733, %v831
        %v833 = vld [vmem:[#allocation4] sm:$0x3]
        %v835 = vperm.slane %v833, 0
        %v836 = vperm.slane %v833, 1
        %v839 = vsel %vm809, %v835, 0.0
        %v840 = vsel %vm809, %v836, 0.0
        %v841 = vadd.f32 %v839, %v840
        %842 = vadd.xlane.f32.xlu0 %v841
        %v843 = vpop.xlane.xlu0 %842
        %v844 = vrot.slane %v843, 4
        %v845 = vadd.f32 %v843, %v844
        %v846 = vrot.slane %v845, 2
        %v847 = vadd.f32 %v845, %v846
        %v848 = vrot.slane %v847, 1
        %v849 = vadd.f32 %v847, %v848
        %s850 = vtos %v849
        %v851 = vstv %s850
        %vm852 = vcmask 0
        %853 = vst.msk [vmem:[%s563] sm:$0x1] %vm852, %v851
        %v854 = vld [vmem:[#allocation5] sm:$0x3]
        %v856 = vperm.slane %v854, 0
        %v857 = vperm.slane %v854, 1
        %v860 = vsel %vm809, %v856, 0.0
        %v861 = vsel %vm809, %v857, 0.0
        %v862 = vadd.f32 %v860, %v861
        %863 = vadd.xlane.f32.xlu0 %v862
        %v864 = vpop.xlane.xlu0 %863
        %v865 = vrot.slane %v864, 4
        %v866 = vadd.f32 %v864, %v865
        %v867 = vrot.slane %v866, 2
        %v868 = vadd.f32 %v866, %v867
        %v869 = vrot.slane %v868, 1
        %v870 = vadd.f32 %v868, %v869
        %s871 = vtos %v870
        %v872 = vstv %s871
        %873 = vst.msk [vmem:[%s569] sm:$0x1] %vm852, %v872
      $region52: #{tpu_custom_call.1} parent=43 // pred_fallthru
        _
      %s874 = sadd.s32 %s28, %s29
      %s875 = smul.u32 2, %s874
      %p876 = scmp.lt.s32.totalorder %s27, 1
      %s877 = scalar_select %p876, %s27, 1
      %p878 = scmp.lt.s32.totalorder %s875, 1
      %s879 = scalar_select %p878, %s875, 1
      %s880 = smul.addr %s877, 2
      %s881 = sadd.s32 %s879, %s880
      %s882 = smul.addr %s881, 8
      %s883 = scalar_lea.vmem %s6, %s882
      %p884 = scmp.lt.s32.totalorder %s27, 1
      %s885 = scalar_select %p884, %s27, 1
      %p886 = scmp.lt.s32.totalorder %s28, 0
      %s887 = scalar_select %p886, %s28, 0
      %s888 = sadd.s32 %s887, %s885
      %s889 = smul.addr %s888, 4
      %s890 = scalar_lea.vmem %s7, %s889
      %p891 = scmp.lt.s32.totalorder %s27, 1
      %s892 = scalar_select %p891, %s27, 1
      %p893 = scmp.lt.s32.totalorder %s28, 0
      %s894 = scalar_select %p893, %s28, 0
      %s895 = sadd.s32 %s894, %s892
      %s896 = smul.addr %s895, 4
      %s897 = scalar_lea.vmem %s8, %s896
      %p898 = scmp.lt.s32.totalorder %s27, 1
      %s899 = scalar_select %p898, %s27, 1
      %p900 = scmp.lt.s32.totalorder %s28, 0
      %s901 = scalar_select %p900, %s28, 0
      %s902 = sadd.s32 %s901, %s899
      %s903 = scalar_lea.vmem %s9, %s902
      %p904 = scmp.lt.s32.totalorder %s27, 1
      %s905 = scalar_select %p904, %s27, 1
      %p906 = scmp.lt.s32.totalorder %s28, 0
      %s907 = scalar_select %p906, %s28, 0
      %s908 = sadd.s32 %s907, %s905
      %s909 = scalar_lea.vmem %s10, %s908
      // Predicated region
      $region53: #{tpu_custom_call.1} parent=43 // pred_check
        %p910 = pneg %p216
      $region54: #{tpu_custom_call.1} parent=43 // pred_check_branch
        %912 = sbr.rel (%p910) target = $region56
      $region55: #{tpu_custom_call.1} parent=43 // pred_region
        %s913 = sadd.s32 %s28, %s29
        %s914 = smul.u32 2, %s913
      $region56: #{tpu_custom_call.1} parent=43 // pred_fallthru
        _
      // Predicated region
      $region57: #{tpu_custom_call.1} parent=43 // pred_check
        %p915 = pneg %p244
      $region58: #{tpu_custom_call.1} parent=43 // pred_check_branch
        %917 = sbr.rel (%p915) target = $region60
      $region59: #{tpu_custom_call.1} parent=43 // pred_region
        _
      $region60: #{tpu_custom_call.1} parent=43 // pred_fallthru
        _
      // Predicated region
      $region61: #{tpu_custom_call.1} parent=43 // pred_check
        %p918 = pneg %p272
      $region62: #{tpu_custom_call.1} parent=43 // pred_check_branch
        %920 = sbr.rel (%p918) target = $region64
      $region63: #{tpu_custom_call.1} parent=43 // pred_region
        _
      $region64: #{tpu_custom_call.1} parent=43 // pred_fallthru
        _
      // Predicated region
      $region65: #{tpu_custom_call.1} parent=43 // pred_check
        %p921 = pneg %p300
      $region66: #{tpu_custom_call.1} parent=43 // pred_check_branch
        %923 = sbr.rel (%p921) target = $region68
      $region67: #{tpu_custom_call.1} parent=43 // pred_region
        _
      $region68: #{tpu_custom_call.1} parent=43 // pred_fallthru
        _
      // Predicated region
      $region69: #{tpu_custom_call.1} parent=43 // pred_check
        %p924 = pneg %p328
      $region70: #{tpu_custom_call.1} parent=43 // pred_check_branch
        %926 = sbr.rel (%p924) target = $region72
      $region71: #{tpu_custom_call.1} parent=43 // pred_region
        _
      $region72: #{tpu_custom_call.1} parent=43 // pred_fallthru
        _
    $region44: #{tpu_custom_call.1} parent=5 // pred_fallthru
      _
    %p927 = scmp.le.s32.totalorder 2, %s17
    // Predicated region
    $region73: #{tpu_custom_call.1} parent=5 // pred_check
      %p928 = pneg %p927
    $region74: #{tpu_custom_call.1} parent=5 // pred_check_branch
      %930 = sbr.rel (%p928) target = $region76
    $region75: #{tpu_custom_call.1} parent=5 // pred_region
      %s931 = ssub.s32 %s17, 2
      // Predicated region
      $region77: #{tpu_custom_call.1} parent=75 // pred_check
        %p932 = pneg %p222
      $region78: #{tpu_custom_call.1} parent=75 // pred_check_branch
        %934 = sbr.rel (%p932) target = $region80
      $region79: #{tpu_custom_call.1} parent=75 // pred_region
        %s935 = sadd.s32 %s31, %s32
        %s936 = smul.u32 2, %s935
        %p937 = scmp.lt.s32.totalorder %s30, 1
        %s938 = scalar_select %p937, %s30, 1
        %p939 = scmp.lt.s32.totalorder %s936, 1
        %s940 = scalar_select %p939, %s936, 1
        %s941 = smul.addr %s938, 2
        %s942 = sadd.s32 %s940, %s941
        %s943 = smul.addr %s942, 8
        %s944 = scalar_lea.vmem %s6, %s943
      $region80: #{tpu_custom_call.1} parent=75 // pred_fallthru
        _
      // Predicated region
      $region81: #{tpu_custom_call.1} parent=75 // pred_check
        %p945 = pneg %p250
      $region82: #{tpu_custom_call.1} parent=75 // pred_check_branch
        %947 = sbr.rel (%p945) target = $region84
      $region83: #{tpu_custom_call.1} parent=75 // pred_region
        %p948 = scmp.lt.s32.totalorder %s30, 1
        %s949 = scalar_select %p948, %s30, 1
        %p950 = scmp.lt.s32.totalorder %s31, 0
        %s951 = scalar_select %p950, %s31, 0
        %s952 = sadd.s32 %s951, %s949
        %s953 = smul.addr %s952, 4
        %s954 = scalar_lea.vmem %s7, %s953
      $region84: #{tpu_custom_call.1} parent=75 // pred_fallthru
        _
      // Predicated region
      $region85: #{tpu_custom_call.1} parent=75 // pred_check
        %p955 = pneg %p278
      $region86: #{tpu_custom_call.1} parent=75 // pred_check_branch
        %957 = sbr.rel (%p955) target = $region88
      $region87: #{tpu_custom_call.1} parent=75 // pred_region
        %p958 = scmp.lt.s32.totalorder %s30, 1
        %s959 = scalar_select %p958, %s30, 1
        %p960 = scmp.lt.s32.totalorder %s31, 0
        %s961 = scalar_select %p960, %s31, 0
        %s962 = sadd.s32 %s961, %s959
        %s963 = smul.addr %s962, 4
        %s964 = scalar_lea.vmem %s8, %s963
      $region88: #{tpu_custom_call.1} parent=75 // pred_fallthru
        _
      // Predicated region
      $region89: #{tpu_custom_call.1} parent=75 // pred_check
        %p965 = pneg %p306
      $region90: #{tpu_custom_call.1} parent=75 // pred_check_branch
        %967 = sbr.rel (%p965) target = $region92
      $region91: #{tpu_custom_call.1} parent=75 // pred_region
        %p968 = scmp.lt.s32.totalorder %s30, 1
        %s969 = scalar_select %p968, %s30, 1
        %p970 = scmp.lt.s32.totalorder %s31, 0
        %s971 = scalar_select %p970, %s31, 0
        %s972 = sadd.s32 %s971, %s969
        %s973 = scalar_lea.vmem %s9, %s972
      $region92: #{tpu_custom_call.1} parent=75 // pred_fallthru
        _
      // Predicated region
      $region93: #{tpu_custom_call.1} parent=75 // pred_check
        %p974 = pneg %p334
      $region94: #{tpu_custom_call.1} parent=75 // pred_check_branch
        %976 = sbr.rel (%p974) target = $region96
      $region95: #{tpu_custom_call.1} parent=75 // pred_region
        %p977 = scmp.lt.s32.totalorder %s30, 1
        %s978 = scalar_select %p977, %s30, 1
        %p979 = scmp.lt.s32.totalorder %s31, 0
        %s980 = scalar_select %p979, %s31, 0
        %s981 = sadd.s32 %s980, %s978
        %s982 = scalar_lea.vmem %s10, %s981
      $region96: #{tpu_custom_call.1} parent=75 // pred_fallthru
        _
    $region76: #{tpu_custom_call.1} parent=5 // pred_fallthru
      _
  $region6: #{tpu_custom_call.1} parent=0 // loop_footer
    %s21 = sadd.s32 1, %s17
  $region7: #{tpu_custom_call.1} parent=0 // loop_footer_branch
    %16 = sbr.rel target = $region3
  $region8: #{tpu_custom_call.1} parent=0 // loop_exit
    _

</llo_original>
